<compile_context>
chip_gen: v7x
topology: tpu7x:2x2x1
jax: 0.10.0
libtpu: 0.0.40
codegen_flags: <defaults>
</compile_context>

<pallas_src>
import functools

import jax
import jax.numpy as jnp
from jax.experimental import pallas as pl
from jax.experimental.pallas import tpu as pltpu


def _conv_t2_1d_kernel(x_ref, w2_ref, b2_ref, w1_ref, b1_ref, o_ref):
    """One spatial tile: stage-1 matmul + ReLU, then stage-2 circulant matmul.

    x_ref : (T*Cin, pt)  f32   input tile, rows ordered (t, ci)
    w2_ref: (R, T*Cin)   bf16  stage-1 weight, rows ordered (g, co, t)
    b2_ref: (R, 1)       f32
    w1_ref: (CW, CW)     bf16  temporal circulant (CW == R: block-diag over g, one
                               matmul; CW == Cout*T: per-g loop for very large R)
    b1_ref: (R, 1)       f32
    o_ref : (R, pt)      f32   planar output tile, rows ordered (g, co, t)
    """
    x = x_ref[...].astype(jnp.bfloat16)

    # Stage 1: ConvTranspose2d (k=s=2), all 4 sub-pixels and all frames as ONE matmul.
    y = jnp.dot(w2_ref[...], x, preferred_element_type=jnp.float32)        # (R, pt)
    y = jnp.maximum(y + b2_ref[...], 0.0)

    # Stage 2: temporal Conv1d (k=3, circular / zero pad) as a circulant matmul.
    y16 = y.astype(jnp.bfloat16)
    cw = w1_ref.shape[0]
    n_blk = o_ref.shape[0] // cw          # == 1 when the circulant is block-diagonal
    for gb in range(n_blk):
        lo = gb * cw
        hi = lo + cw
        z = jnp.dot(w1_ref[...], y16[lo:hi, :], preferred_element_type=jnp.float32)
        o_ref[lo:hi, :] = (z + b1_ref[lo:hi, :]).astype(o_ref.dtype)


def _chip_info():
    """Best-effort chip query: (multi_tensorcore, tile_budget, vmem_limit, pt_cap)."""
    kind = ""
    try:
        kind = jax.devices()[0].device_kind.lower()
    except Exception:
        pass
    is_v7 = "v7" in kind
    is_old = ("v2" in kind) or ("v3" in kind)
    multi_tc = is_v7 or ("v4" in kind) or ("v5p" in kind)
    if is_v7:
        # 64 MiB physical VMEM per TC on v7x: keep tiles + limit conservative.
        return multi_tc, 24 * 2**20, 56 * 2**20, 4096
    if is_old:
        # v2/v3: small VMEM; do not override the compiler's scoped-VMEM default.
        return multi_tc, 6 * 2**20, None, 2048
    # v4 / v5e / v5p / v6e: 128 MiB physical VMEM.
    return multi_tc, 64 * 2**20, 100 * 2**20, 8192


def _pick_p_tile(P, bytes_per_lane, budget, cap, multi_tc, p_tile):
    """Pick the lane-tile size.

    Prefers exact divisors of P that are multiples of 128 (no padded output, no
    post-kernel slice copy); only forces >=2 (even) grid steps on multi-TC chips.
    Returns (pt, needs_pad).
    """
    if p_tile is not None:
        pt = max(1, min(p_tile, P))
        return pt, (P % pt != 0)
    cap = max(128, min(cap, budget // max(1, bytes_per_lane)))
    cands = []
    if P <= cap:
        cands.append(P)
    d = (min(P, cap) // 128) * 128
    while d >= 128:
        if P % d == 0 and d not in cands:
            cands.append(d)
        d -= 128
    if not cands:
        # Rare fallback (P > cap with no 128-multiple divisor that fits): pad lanes.
        return max(128, (cap // 128) * 128), True
    pt = cands[0]
    if multi_tc and P // pt < 2:
        for c in cands[1:]:
            if (P // c) % 2 == 0:
                pt = c
                break
    return pt, False


@functools.partial(jax.jit, static_argnames=("tcp", "p_tile"))
def conv_transpose2_1d(x, w2, b2, w1, b1, *, tcp=True, p_tile=None):
    """x: (T, Cin, d1, d2); w2: (Cin, Cout, 2, 2); b2: (Cout,);
       w1: (Cout, Cout, 3); b1: (Cout,).  Returns (T, Cout, 2*d1, 2*d2)."""
    T, Cin, d1, d2 = x.shape
    Cout = w2.shape[1]
    P = d1 * d2
    CT = Cout * T            # one sub-pixel row block, ordered (co, t)
    R = 4 * CT               # output rows, ordered (g = ki*2+kj, co, t)
    K1 = T * Cin             # stage-1 contraction, ordered (t, ci)
    f32, bf16 = jnp.float32, jnp.bfloat16

    # ---- weight preprocessing (cheap, traced once) --------------------------------
    # ConvTranspose2d(k=2,s=2): out[t,co,2i+ki,2j+kj] = b2[co] + sum_ci w2[ci,co,ki,kj]*x[t,ci,i,j]
    w2g = jnp.transpose(w2.astype(f32), (2, 3, 1, 0)).reshape(4, Cout, Cin)  # (g, co, ci)
    eye_t = jnp.eye(T, dtype=f32)
    # W2big[(g,co,t_out), (t_in,ci)] = w2g[g,co,ci] * I[t_out,t_in]
    w2_big = jnp.einsum('goc,ts->gotsc', w2g, eye_t).reshape(R, K1).astype(bf16)
    b2_big = jnp.broadcast_to(b2.astype(f32)[None, :, None], (4, Cout, T)).reshape(R, 1)

    # Temporal Conv1d(k=3): out[t] = b1 + sum_k w1[:,:,k] . y[t+k-1] with circular wrap
    # (tcp=True) or zero padding=1 (tcp=False).  Expressed as a (co,t)-ordered circulant.
    tt = jnp.arange(T)
    taps = []
    for k in range(3):
        t_src = tt[:, None] + (k - 1)                  # source frame per t_out
        if tcp:
            m = (t_src % T) == tt[None, :]
        else:
            m = t_src == tt[None, :]                   # out-of-range taps contribute 0
        taps.append(m.astype(f32))
    S = jnp.stack(taps, axis=0)                        # (3, T_out, T_in)
    # W1c[(co,t_out), (ci,t_in)] = sum_k w1[co,ci,k] * S[k,t_out,t_in]
    w1_c = jnp.einsum('oik,kts->otis', w1.astype(f32), S).reshape(CT, CT)
    b1_big = jnp.broadcast_to(b1.astype(f32)[None, :, None], (4, Cout, T)).reshape(R, 1)

    # Stage-2 weight: block-diagonal over the 4 sub-pixels when small enough, so the
    # whole temporal conv is ONE MXU matmul with a 4x deeper (== R) contraction.
    # TODO(synk): for large Cout*T the (R,R)/O(T^2) weights stop fitting VMEM; switch to
    # contracting over Cin only (T folded onto the lanes) and a per-g circulant there.
    if R <= 1024:
        w1_pass = jnp.kron(jnp.eye(4, dtype=f32), w1_c).astype(bf16)       # (R, R)
    else:
        w1_pass = w1_c.astype(bf16)                                        # (CT, CT)
    cw = w1_pass.shape[0]

    # ---- spatial tiling -------------------------------------------------------------
    multi_tc, tile_budget, vmem_limit, pt_cap = _chip_info()
    const_bytes = 2 * (w2_big.size * 2 + w1_pass.size * 2
                       + (b2_big.size + b1_big.size) * 4)
    # f32 bytes per lane: 2x-buffered x tile + 2x-buffered out tile + stage temporaries.
    bytes_per_lane = 4 * (2 * K1 + 2 * R) + 4 * 2 * R + 2 * R
    pt, needs_pad = _pick_p_tile(
        P, bytes_per_lane, max(tile_budget - const_bytes, 4 * 2**20),
        pt_cap, multi_tc, p_tile)
    n_p = pl.cdiv(P, pt)
    P_pad = n_p * pt

    x_r = x.reshape(K1, P)                             # free reshape (row-major)
    if needs_pad and P_pad != P:
        x_r = jnp.pad(x_r, ((0, 0), (0, P_pad - P)))

    # Advisory cost: true MACs only (no structural zeros of the folded weights).
    flops = 2 * R * P * (Cin + 3 * Cout)
    bytes_accessed = (x_r.size * x_r.dtype.itemsize
                      + R * P_pad * x.dtype.itemsize
                      + 2 * (w2_big.size + w1_pass.size)
                      + 4 * (b2_big.size + b1_big.size))

    cp_kwargs = dict(dimension_semantics=("parallel",))
    if vmem_limit is not None:
        cp_kwargs["vmem_limit_bytes"] = vmem_limit

    out_flat = pl.pallas_call(
        _conv_t2_1d_kernel,
        out_shape=jax.ShapeDtypeStruct((R, P_pad), x.dtype),
        grid_spec=pltpu.PrefetchScalarGridSpec(
            num_scalar_prefetch=0,
            grid=(n_p,),
            in_specs=[
                pl.BlockSpec((K1, pt), lambda p: (0, p)),
                pl.BlockSpec((R, K1), lambda p: (0, 0)),
                pl.BlockSpec((R, 1), lambda p: (0, 0)),
                pl.BlockSpec((cw, cw), lambda p: (0, 0)),
                pl.BlockSpec((R, 1), lambda p: (0, 0)),
            ],
            out_specs=pl.BlockSpec((R, pt), lambda p: (0, p)),
        ),
        compiler_params=pltpu.CompilerParams(**cp_kwargs),
        cost_estimate=pl.CostEstimate(
            flops=flops, transcendentals=0, bytes_accessed=bytes_accessed),
    )(x_r, w2_big, b2_big, w1_pass, b1_big)

    if P_pad != P:
        out_flat = out_flat[:, :P]

    # De-interleave the 2x2 sub-pixel planes into the upsampled grid (one XLA transpose).
    # TODO(synk): fusing this into the kernel requires a strided sub-pixel lane scatter
    # of the output; left as wrapper glue — drop it entirely if the consumer can take
    # the planar (2, 2, Cout, T, d1, d2) layout directly.
    y = out_flat.reshape(2, 2, Cout, T, d1, d2)        # (ki, kj, co, t, i, j)
    y = jnp.transpose(y, (3, 2, 4, 0, 5, 1))           # (t, co, i, ki, j, kj)
    return y.reshape(T, Cout, 2 * d1, 2 * d2)


def reference(x, w2, b2, w1, b1, tcp=True):
    """Pure-JAX reference mirroring the PyTorch forward."""
    T, Cin, d1, d2 = x.shape
    Cout = w2.shape[1]
    y = jnp.einsum('tcij,cokl->toikjl', x, w2).reshape(T, Cout, 2 * d1, 2 * d2)
    y = jnp.maximum(y + b2[None, :, None, None], 0.0)
    if tcp:
        y_pad = jnp.concatenate([y[T - 1:T], y, y[0:1]], axis=0)
    else:
        z = jnp.zeros_like(y[0:1])
        y_pad = jnp.concatenate([z, y, z], axis=0)
    acc = jnp.zeros((T, Cout, 2 * d1, 2 * d2), jnp.float32)
    for k in range(3):
        acc = acc + jnp.einsum('oi,tiab->toab', w1[:, :, k], y_pad[k:k + T])
    return acc + b1[None, :, None, None]


if __name__ == "__main__":
    key = jax.random.PRNGKey(0)
    in_chans, chans = 4, 8
    T, d1, d2 = 8, 16, 16

    k1, k2, k3, k4, k5 = jax.random.split(key, 5)
    x = jax.random.normal(k1, (T, in_chans, d1, d2), jnp.float32)
    # nn.ConvTranspose2d(in_chans, chans, (2,2)): weight (in, out, 2, 2), bias (out,)
    w2 = jax.random.normal(k2, (in_chans, chans, 2, 2), jnp.float32) * 0.3
    b2 = jax.random.normal(k3, (chans,), jnp.float32) * 0.1
    # nn.Conv1d(chans, chans, 3): weight (out, in, 3), bias (out,)
    w1 = jax.random.normal(k4, (chans, chans, 3), jnp.float32) * 0.2
    b1 = jax.random.normal(k5, (chans,), jnp.float32) * 0.1

    out = jax.block_until_ready(conv_transpose2_1d(x, w2, b2, w1, b1, tcp=True))
    ref = reference(x, w2, b2, w1, b1, tcp=True)
    assert out.shape == (T, chans, 2 * d1, 2 * d2), out.shape
    # bf16 MXU inputs with f32 accumulation -> looser tolerance than a pure-f32 path.
    assert jnp.allclose(out, ref, rtol=5e-2, atol=5e-2), float(
        jnp.max(jnp.abs(out - ref)))

    # tcp=False path (Conv1d with zero padding=1, as in the PyTorch module).
    out2 = jax.block_until_ready(conv_transpose2_1d(x, w2, b2, w1, b1, tcp=False))
    ref2 = reference(x, w2, b2, w1, b1, tcp=False)
    assert jnp.allclose(out2, ref2, rtol=5e-2, atol=5e-2), float(
        jnp.max(jnp.abs(out2 - ref2)))

    print("KERNEL_OK")
</pallas_src>

<mosaic_0001>
module attributes {stable_mosaic.version = 11 : i64} {
  func.func @_conv_t2_1d_kernel(%arg0: i32, %arg1: memref<32x256xf32, #tpu.memory_space<vmem>>, %arg2: memref<256x32xbf16, #tpu.memory_space<vmem>>, %arg3: memref<256x1xf32, #tpu.memory_space<vmem>>, %arg4: memref<256x256xbf16, #tpu.memory_space<vmem>>, %arg5: memref<256x1xf32, #tpu.memory_space<vmem>>, %arg6: memref<256x256xf32, #tpu.memory_space<vmem>>) attributes {dimension_semantics = [#tpu.dimension_semantics<parallel>], iteration_bounds = array<i64: 1>, scalar_prefetch = 0 : i64, scratch_operands = 0 : i64, tpu.core_type = #tpu.core_type<tc>, window_params = [{transform_indices = @transform_0, window_bounds = array<i64: 32, 256>}, {pipeline_mode = #tpu.pipeline_mode<synchronous>, transform_indices = @transform_1, window_bounds = array<i64: 256, 32>}, {pipeline_mode = #tpu.pipeline_mode<synchronous>, transform_indices = @transform_2, window_bounds = array<i64: 256, 1>}, {pipeline_mode = #tpu.pipeline_mode<synchronous>, transform_indices = @transform_3, window_bounds = array<i64: 256, 256>}, {pipeline_mode = #tpu.pipeline_mode<synchronous>, transform_indices = @transform_4, window_bounds = array<i64: 256, 1>}, {transform_indices = @transform_5, window_bounds = array<i64: 256, 256>}]} {
    %c0 = arith.constant 0 : index
    %c0_0 = arith.constant 0 : index
    %0 = vector.load %arg1[%c0, %c0_0] : memref<32x256xf32, #tpu.memory_space<vmem>>, vector<32x256xf32>
    %1 = arith.truncf %0 : vector<32x256xf32> to vector<32x256xbf16>
    %c0_1 = arith.constant 0 : index
    %c0_2 = arith.constant 0 : index
    %2 = vector.load %arg2[%c0_1, %c0_2] : memref<256x32xbf16, #tpu.memory_space<vmem>>, vector<256x32xbf16>
    %cst = arith.constant dense<0.000000e+00> : vector<256x256xf32>
    %3 = tpu.matmul %2, %1, %cst {dimension_numbers = #tpu.dot_dimension_numbers<[1], [0], [0], [1], [0, 0, 1, 1], [], []>} : vector<256x32xbf16>, vector<32x256xbf16>, vector<256x256xf32> -> vector<256x256xf32>
    %c0_3 = arith.constant 0 : index
    %c0_4 = arith.constant 0 : index
    %4 = vector.load %arg3[%c0_3, %c0_4] : memref<256x1xf32, #tpu.memory_space<vmem>>, vector<256x1xf32>
    %5 = vector.broadcast %4 : vector<256x1xf32> to vector<256x256xf32>
    %6 = arith.addf %3, %5 : vector<256x256xf32>
    %cst_5 = arith.constant 0.000000e+00 : f32
    %7 = vector.broadcast %cst_5 : f32 to vector<256x256xf32>
    %8 = arith.maximumf %6, %7 : vector<256x256xf32>
    %9 = arith.truncf %8 : vector<256x256xf32> to vector<256x256xbf16>
    %c0_6 = arith.constant 0 : index
    %c0_7 = arith.constant 0 : index
    %10 = vector.load %arg4[%c0_6, %c0_7] : memref<256x256xbf16, #tpu.memory_space<vmem>>, vector<256x256xbf16>
    %cst_8 = arith.constant dense<0.000000e+00> : vector<256x256xf32>
    %11 = tpu.matmul %10, %9, %cst_8 {dimension_numbers = #tpu.dot_dimension_numbers<[1], [0], [0], [1], [0, 0, 1, 1], [], []>} : vector<256x256xbf16>, vector<256x256xbf16>, vector<256x256xf32> -> vector<256x256xf32>
    %c0_9 = arith.constant 0 : index
    %c0_10 = arith.constant 0 : index
    %12 = vector.load %arg5[%c0_9, %c0_10] : memref<256x1xf32, #tpu.memory_space<vmem>>, vector<256x1xf32>
    %13 = vector.broadcast %12 : vector<256x1xf32> to vector<256x256xf32>
    %14 = arith.addf %11, %13 : vector<256x256xf32>
    %c0_11 = arith.constant 0 : index
    %c0_12 = arith.constant 0 : index
    %15 = vector.load %arg6[%c0_11, %c0_12] : memref<256x256xf32, #tpu.memory_space<vmem>>, vector<256x256xf32>
    tpu.vector_store %arg6[%c0_11, %c0_12], %14 {strides = array<i32>} : memref<256x256xf32, #tpu.memory_space<vmem>>, vector<256x256xf32>,
    return
  }
  func.func @transform_0(%arg0: i32) -> (i32, i32) {
    %c0_i32 = arith.constant 0 : i32
    %c0_i32_0 = arith.constant 0 : i32
    return %c0_i32, %arg0 : i32, i32
  }
  func.func @transform_1(%arg0: i32) -> (i32, i32) {
    %c0_i32 = arith.constant 0 : i32
    %c0_i32_0 = arith.constant 0 : i32
    %c0_i32_1 = arith.constant 0 : i32
    return %c0_i32, %c0_i32_0 : i32, i32
  }
  func.func @transform_2(%arg0: i32) -> (i32, i32) {
    %c0_i32 = arith.constant 0 : i32
    %c0_i32_0 = arith.constant 0 : i32
    %c0_i32_1 = arith.constant 0 : i32
    return %c0_i32, %c0_i32_0 : i32, i32
  }
  func.func @transform_3(%arg0: i32) -> (i32, i32) {
    %c0_i32 = arith.constant 0 : i32
    %c0_i32_0 = arith.constant 0 : i32
    %c0_i32_1 = arith.constant 0 : i32
    return %c0_i32, %c0_i32_0 : i32, i32
  }
  func.func @transform_4(%arg0: i32) -> (i32, i32) {
    %c0_i32 = arith.constant 0 : i32
    %c0_i32_0 = arith.constant 0 : i32
    %c0_i32_1 = arith.constant 0 : i32
    return %c0_i32, %c0_i32_0 : i32, i32
  }
  func.func @transform_5(%arg0: i32) -> (i32, i32) {
    %c0_i32 = arith.constant 0 : i32
    %c0_i32_0 = arith.constant 0 : i32
    return %c0_i32, %arg0 : i32, i32
  }
}

</mosaic_0001>

<llo_original>
// kernel: mul.4
$region0: #{mul.4}
  %s0 = inlined_call_operand.vmem [shape: f32[8,8,8,8], index: 0, kind: input, shape index: {}]
  %s1 = inlined_call_operand.vmem [shape: f32[64,64], index: 1, kind: output, shape index: {}]
  %v2 = vld [vmem:[%s0] ss:$8 sm:$0xf]
  %v3 = vld [vmem:[%s0] ss:$8 sm:$0xf0]
  %vm4 = vcmask 1047556
  %v5 = vsel %vm4, %v3, %v2
  %vm6 = vcmask 64512
  %7 = vst.msk [vmem:[%s1] sm:$0xff] %vm6, %v5
  %s8 = scalar_lea.vmem %s0, 64
  %v9 = vld [vmem:[%s8] ss:$8 sm:$0xf]
  %s10 = scalar_lea.vmem %s0, 64
  %v11 = vld [vmem:[%s10] ss:$8 sm:$0xf0]
  %vm12 = vcmask 1047556
  %v13 = vsel %vm12, %v11, %v9
  %vm14 = vcmask 64512
  %s15 = scalar_lea.vmem %s1, 8
  %16 = vst.msk [vmem:[%s15] sm:$0xff] %vm14, %v13
  %s17 = scalar_lea.vmem %s0, 128
  %v18 = vld [vmem:[%s17] ss:$8 sm:$0xf]
  %s19 = scalar_lea.vmem %s0, 128
  %v20 = vld [vmem:[%s19] ss:$8 sm:$0xf0]
  %vm21 = vcmask 1047556
  %v22 = vsel %vm21, %v20, %v18
  %vm23 = vcmask 64512
  %s24 = scalar_lea.vmem %s1, 16
  %25 = vst.msk [vmem:[%s24] sm:$0xff] %vm23, %v22
  %s26 = scalar_lea.vmem %s0, 192
  %v27 = vld [vmem:[%s26] ss:$8 sm:$0xf]
  %s28 = scalar_lea.vmem %s0, 192
  %v29 = vld [vmem:[%s28] ss:$8 sm:$0xf0]
  %vm30 = vcmask 1047556
  %v31 = vsel %vm30, %v29, %v27
  %vm32 = vcmask 64512
  %s33 = scalar_lea.vmem %s1, 24
  %34 = vst.msk [vmem:[%s33] sm:$0xff] %vm32, %v31
  %s35 = scalar_lea.vmem %s0, 256
  %v36 = vld [vmem:[%s35] ss:$8 sm:$0xf]
  %s37 = scalar_lea.vmem %s0, 256
  %v38 = vld [vmem:[%s37] ss:$8 sm:$0xf0]
  %vm39 = vcmask 1047556
  %v40 = vsel %vm39, %v38, %v36
  %vm41 = vcmask 64512
  %s42 = scalar_lea.vmem %s1, 32
  %43 = vst.msk [vmem:[%s42] sm:$0xff] %vm41, %v40
  %s44 = scalar_lea.vmem %s0, 320
  %v45 = vld [vmem:[%s44] ss:$8 sm:$0xf]
  %s46 = scalar_lea.vmem %s0, 320
  %v47 = vld [vmem:[%s46] ss:$8 sm:$0xf0]
  %vm48 = vcmask 1047556
  %v49 = vsel %vm48, %v47, %v45
  %vm50 = vcmask 64512
  %s51 = scalar_lea.vmem %s1, 40
  %52 = vst.msk [vmem:[%s51] sm:$0xff] %vm50, %v49
  %s53 = scalar_lea.vmem %s0, 384
  %v54 = vld [vmem:[%s53] ss:$8 sm:$0xf]
  %s55 = scalar_lea.vmem %s0, 384
  %v56 = vld [vmem:[%s55] ss:$8 sm:$0xf0]
  %vm57 = vcmask 1047556
  %v58 = vsel %vm57, %v56, %v54
  %vm59 = vcmask 64512
  %s60 = scalar_lea.vmem %s1, 48
  %61 = vst.msk [vmem:[%s60] sm:$0xff] %vm59, %v58
  %s62 = scalar_lea.vmem %s0, 448
  %v63 = vld [vmem:[%s62] ss:$8 sm:$0xf]
  %s64 = scalar_lea.vmem %s0, 448
  %v65 = vld [vmem:[%s64] ss:$8 sm:$0xf0]
  %vm66 = vcmask 1047556
  %v67 = vsel %vm66, %v65, %v63
  %vm68 = vcmask 64512
  %s69 = scalar_lea.vmem %s1, 56
  %70 = vst.msk [vmem:[%s69] sm:$0xff] %vm68, %v67
  %s71 = scalar_lea.vmem %s0, 7
  %v72 = vld [vmem:[%s71] ss:$8 sm:$0xf]
  %s73 = scalar_lea.vmem %s0, 7
  %v74 = vld [vmem:[%s73] ss:$8 sm:$0xf0]
  %vm75 = vcmask 1047556
  %v76 = vsel %vm75, %v74, %v72
  %77 = vrot.lane.b32.xlu0 %v76, 56
  %v78 = vpop.permute.xlu0 %77
  %vm79 = vcmask 523712
  %80 = vst.msk [vmem:[%s1] sm:$0xff] %vm79, %v78
  %s81 = scalar_lea.vmem %s0, 263
  %v82 = vld [vmem:[%s81] ss:$8 sm:$0xf]
  %s83 = scalar_lea.vmem %s0, 263
  %v84 = vld [vmem:[%s83] ss:$8 sm:$0xf0]
  %vm85 = vcmask 1047556
  %v86 = vsel %vm85, %v84, %v82
  %87 = vrot.lane.b32.xlu0 %v86, 56
  %v88 = vpop.permute.xlu0 %87
  %vm89 = vcmask 523712
  %s90 = scalar_lea.vmem %s1, 32
  %91 = vst.msk [vmem:[%s90] sm:$0xff] %vm89, %v88
  %s92 = scalar_lea.vmem %s0, 71
  %v93 = vld [vmem:[%s92] ss:$8 sm:$0xf]
  %s94 = scalar_lea.vmem %s0, 71
  %v95 = vld [vmem:[%s94] ss:$8 sm:$0xf0]
  %vm96 = vcmask 1047556
  %v97 = vsel %vm96, %v95, %v93
  %98 = vrot.lane.b32.xlu0 %v97, 56
  %v99 = vpop.permute.xlu0 %98
  %vm100 = vcmask 523712
  %s101 = scalar_lea.vmem %s1, 8
  %102 = vst.msk [vmem:[%s101] sm:$0xff] %vm100, %v99
  %s103 = scalar_lea.vmem %s0, 327
  %v104 = vld [vmem:[%s103] ss:$8 sm:$0xf]
  %s105 = scalar_lea.vmem %s0, 327
  %v106 = vld [vmem:[%s105] ss:$8 sm:$0xf0]
  %vm107 = vcmask 1047556
  %v108 = vsel %vm107, %v106, %v104
  %109 = vrot.lane.b32.xlu0 %v108, 56
  %v110 = vpop.permute.xlu0 %109
  %vm111 = vcmask 523712
  %s112 = scalar_lea.vmem %s1, 40
  %113 = vst.msk [vmem:[%s112] sm:$0xff] %vm111, %v110
  %s114 = scalar_lea.vmem %s0, 135
  %v115 = vld [vmem:[%s114] ss:$8 sm:$0xf]
  %s116 = scalar_lea.vmem %s0, 135
  %v117 = vld [vmem:[%s116] ss:$8 sm:$0xf0]
  %vm118 = vcmask 1047556
  %v119 = vsel %vm118, %v117, %v115
  %120 = vrot.lane.b32.xlu0 %v119, 56
  %v121 = vpop.permute.xlu0 %120
  %vm122 = vcmask 523712
  %s123 = scalar_lea.vmem %s1, 16
  %124 = vst.msk [vmem:[%s123] sm:$0xff] %vm122, %v121
  %s125 = scalar_lea.vmem %s0, 391
  %v126 = vld [vmem:[%s125] ss:$8 sm:$0xf]
  %s127 = scalar_lea.vmem %s0, 391
  %v128 = vld [vmem:[%s127] ss:$8 sm:$0xf0]
  %vm129 = vcmask 1047556
  %v130 = vsel %vm129, %v128, %v126
  %131 = vrot.lane.b32.xlu0 %v130, 56
  %v132 = vpop.permute.xlu0 %131
  %vm133 = vcmask 523712
  %s134 = scalar_lea.vmem %s1, 48
  %135 = vst.msk [vmem:[%s134] sm:$0xff] %vm133, %v132
  %s136 = scalar_lea.vmem %s0, 199
  %v137 = vld [vmem:[%s136] ss:$8 sm:$0xf]
  %s138 = scalar_lea.vmem %s0, 199
  %v139 = vld [vmem:[%s138] ss:$8 sm:$0xf0]
  %vm140 = vcmask 1047556
  %v141 = vsel %vm140, %v139, %v137
  %142 = vrot.lane.b32.xlu0 %v141, 56
  %v143 = vpop.permute.xlu0 %142
  %vm144 = vcmask 523712
  %s145 = scalar_lea.vmem %s1, 24
  %146 = vst.msk [vmem:[%s145] sm:$0xff] %vm144, %v143
  %s147 = scalar_lea.vmem %s0, 455
  %v148 = vld [vmem:[%s147] ss:$8 sm:$0xf]
  %s149 = scalar_lea.vmem %s0, 455
  %v150 = vld [vmem:[%s149] ss:$8 sm:$0xf0]
  %vm151 = vcmask 1047556
  %v152 = vsel %vm151, %v150, %v148
  %153 = vrot.lane.b32.xlu0 %v152, 56
  %v154 = vpop.permute.xlu0 %153
  %vm155 = vcmask 523712
  %s156 = scalar_lea.vmem %s1, 56
  %157 = vst.msk [vmem:[%s156] sm:$0xff] %vm155, %v154
  %s158 = scalar_lea.vmem %s0, 6
  %v159 = vld [vmem:[%s158] ss:$8 sm:$0xf]
  %s160 = scalar_lea.vmem %s0, 6
  %v161 = vld [vmem:[%s160] ss:$8 sm:$0xf0]
  %vm162 = vcmask 1047556
  %v163 = vsel %vm162, %v161, %v159
  %164 = vrot.lane.b32.xlu0 %v163, 48
  %v165 = vpop.permute.xlu0 %164
  %vm166 = vcmask 458112
  %167 = vst.msk [vmem:[%s1] sm:$0xff] %vm166, %v165
  %s168 = scalar_lea.vmem %s0, 262
  %v169 = vld [vmem:[%s168] ss:$8 sm:$0xf]
  %s170 = scalar_lea.vmem %s0, 262
  %v171 = vld [vmem:[%s170] ss:$8 sm:$0xf0]
  %vm172 = vcmask 1047556
  %v173 = vsel %vm172, %v171, %v169
  %174 = vrot.lane.b32.xlu0 %v173, 48
  %v175 = vpop.permute.xlu0 %174
  %vm176 = vcmask 458112
  %s177 = scalar_lea.vmem %s1, 32
  %178 = vst.msk [vmem:[%s177] sm:$0xff] %vm176, %v175
  %s179 = scalar_lea.vmem %s0, 70
  %v180 = vld [vmem:[%s179] ss:$8 sm:$0xf]
  %s181 = scalar_lea.vmem %s0, 70
  %v182 = vld [vmem:[%s181] ss:$8 sm:$0xf0]
  %vm183 = vcmask 1047556
  %v184 = vsel %vm183, %v182, %v180
  %185 = vrot.lane.b32.xlu0 %v184, 48
  %v186 = vpop.permute.xlu0 %185
  %vm187 = vcmask 458112
  %s188 = scalar_lea.vmem %s1, 8
  %189 = vst.msk [vmem:[%s188] sm:$0xff] %vm187, %v186
  %s190 = scalar_lea.vmem %s0, 326
  %v191 = vld [vmem:[%s190] ss:$8 sm:$0xf]
  %s192 = scalar_lea.vmem %s0, 326
  %v193 = vld [vmem:[%s192] ss:$8 sm:$0xf0]
  %vm194 = vcmask 1047556
  %v195 = vsel %vm194, %v193, %v191
  %196 = vrot.lane.b32.xlu0 %v195, 48
  %v197 = vpop.permute.xlu0 %196
  %vm198 = vcmask 458112
  %s199 = scalar_lea.vmem %s1, 40
  %200 = vst.msk [vmem:[%s199] sm:$0xff] %vm198, %v197
  %s201 = scalar_lea.vmem %s0, 134
  %v202 = vld [vmem:[%s201] ss:$8 sm:$0xf]
  %s203 = scalar_lea.vmem %s0, 134
  %v204 = vld [vmem:[%s203] ss:$8 sm:$0xf0]
  %vm205 = vcmask 1047556
  %v206 = vsel %vm205, %v204, %v202
  %207 = vrot.lane.b32.xlu0 %v206, 48
  %v208 = vpop.permute.xlu0 %207
  %vm209 = vcmask 458112
  %s210 = scalar_lea.vmem %s1, 16
  %211 = vst.msk [vmem:[%s210] sm:$0xff] %vm209, %v208
  %s212 = scalar_lea.vmem %s0, 390
  %v213 = vld [vmem:[%s212] ss:$8 sm:$0xf]
  %s214 = scalar_lea.vmem %s0, 390
  %v215 = vld [vmem:[%s214] ss:$8 sm:$0xf0]
  %vm216 = vcmask 1047556
  %v217 = vsel %vm216, %v215, %v213
  %218 = vrot.lane.b32.xlu0 %v217, 48
  %v219 = vpop.permute.xlu0 %218
  %vm220 = vcmask 458112
  %s221 = scalar_lea.vmem %s1, 48
  %222 = vst.msk [vmem:[%s221] sm:$0xff] %vm220, %v219
  %s223 = scalar_lea.vmem %s0, 198
  %v224 = vld [vmem:[%s223] ss:$8 sm:$0xf]
  %s225 = scalar_lea.vmem %s0, 198
  %v226 = vld [vmem:[%s225] ss:$8 sm:$0xf0]
  %vm227 = vcmask 1047556
  %v228 = vsel %vm227, %v226, %v224
  %229 = vrot.lane.b32.xlu0 %v228, 48
  %v230 = vpop.permute.xlu0 %229
  %vm231 = vcmask 458112
  %s232 = scalar_lea.vmem %s1, 24
  %233 = vst.msk [vmem:[%s232] sm:$0xff] %vm231, %v230
  %s234 = scalar_lea.vmem %s0, 454
  %v235 = vld [vmem:[%s234] ss:$8 sm:$0xf]
  %s236 = scalar_lea.vmem %s0, 454
  %v237 = vld [vmem:[%s236] ss:$8 sm:$0xf0]
  %vm238 = vcmask 1047556
  %v239 = vsel %vm238, %v237, %v235
  %240 = vrot.lane.b32.xlu0 %v239, 48
  %v241 = vpop.permute.xlu0 %240
  %vm242 = vcmask 458112
  %s243 = scalar_lea.vmem %s1, 56
  %244 = vst.msk [vmem:[%s243] sm:$0xff] %vm242, %v241
  %s245 = scalar_lea.vmem %s0, 5
  %v246 = vld [vmem:[%s245] ss:$8 sm:$0xf]
  %s247 = scalar_lea.vmem %s0, 5
  %v248 = vld [vmem:[%s247] ss:$8 sm:$0xf0]
  %vm249 = vcmask 1047556
  %v250 = vsel %vm249, %v248, %v246
  %251 = vrot.lane.b32.xlu0 %v250, 40
  %v252 = vpop.permute.xlu0 %251
  %vm253 = vcmask 392512
  %254 = vst.msk [vmem:[%s1] sm:$0xff] %vm253, %v252
  %s255 = scalar_lea.vmem %s0, 261
  %v256 = vld [vmem:[%s255] ss:$8 sm:$0xf]
  %s257 = scalar_lea.vmem %s0, 261
  %v258 = vld [vmem:[%s257] ss:$8 sm:$0xf0]
  %vm259 = vcmask 1047556
  %v260 = vsel %vm259, %v258, %v256
  %261 = vrot.lane.b32.xlu0 %v260, 40
  %v262 = vpop.permute.xlu0 %261
  %vm263 = vcmask 392512
  %s264 = scalar_lea.vmem %s1, 32
  %265 = vst.msk [vmem:[%s264] sm:$0xff] %vm263, %v262
  %s266 = scalar_lea.vmem %s0, 69
  %v267 = vld [vmem:[%s266] ss:$8 sm:$0xf]
  %s268 = scalar_lea.vmem %s0, 69
  %v269 = vld [vmem:[%s268] ss:$8 sm:$0xf0]
  %vm270 = vcmask 1047556
  %v271 = vsel %vm270, %v269, %v267
  %272 = vrot.lane.b32.xlu0 %v271, 40
  %v273 = vpop.permute.xlu0 %272
  %vm274 = vcmask 392512
  %s275 = scalar_lea.vmem %s1, 8
  %276 = vst.msk [vmem:[%s275] sm:$0xff] %vm274, %v273
  %s277 = scalar_lea.vmem %s0, 325
  %v278 = vld [vmem:[%s277] ss:$8 sm:$0xf]
  %s279 = scalar_lea.vmem %s0, 325
  %v280 = vld [vmem:[%s279] ss:$8 sm:$0xf0]
  %vm281 = vcmask 1047556
  %v282 = vsel %vm281, %v280, %v278
  %283 = vrot.lane.b32.xlu0 %v282, 40
  %v284 = vpop.permute.xlu0 %283
  %vm285 = vcmask 392512
  %s286 = scalar_lea.vmem %s1, 40
  %287 = vst.msk [vmem:[%s286] sm:$0xff] %vm285, %v284
  %s288 = scalar_lea.vmem %s0, 133
  %v289 = vld [vmem:[%s288] ss:$8 sm:$0xf]
  %s290 = scalar_lea.vmem %s0, 133
  %v291 = vld [vmem:[%s290] ss:$8 sm:$0xf0]
  %vm292 = vcmask 1047556
  %v293 = vsel %vm292, %v291, %v289
  %294 = vrot.lane.b32.xlu0 %v293, 40
  %v295 = vpop.permute.xlu0 %294
  %vm296 = vcmask 392512
  %s297 = scalar_lea.vmem %s1, 16
  %298 = vst.msk [vmem:[%s297] sm:$0xff] %vm296, %v295
  %s299 = scalar_lea.vmem %s0, 389
  %v300 = vld [vmem:[%s299] ss:$8 sm:$0xf]
  %s301 = scalar_lea.vmem %s0, 389
  %v302 = vld [vmem:[%s301] ss:$8 sm:$0xf0]
  %vm303 = vcmask 1047556
  %v304 = vsel %vm303, %v302, %v300
  %305 = vrot.lane.b32.xlu0 %v304, 40
  %v306 = vpop.permute.xlu0 %305
  %vm307 = vcmask 392512
  %s308 = scalar_lea.vmem %s1, 48
  %309 = vst.msk [vmem:[%s308] sm:$0xff] %vm307, %v306
  %s310 = scalar_lea.vmem %s0, 197
  %v311 = vld [vmem:[%s310] ss:$8 sm:$0xf]
  %s312 = scalar_lea.vmem %s0, 197
  %v313 = vld [vmem:[%s312] ss:$8 sm:$0xf0]
  %vm314 = vcmask 1047556
  %v315 = vsel %vm314, %v313, %v311
  %316 = vrot.lane.b32.xlu0 %v315, 40
  %v317 = vpop.permute.xlu0 %316
  %vm318 = vcmask 392512
  %s319 = scalar_lea.vmem %s1, 24
  %320 = vst.msk [vmem:[%s319] sm:$0xff] %vm318, %v317
  %s321 = scalar_lea.vmem %s0, 453
  %v322 = vld [vmem:[%s321] ss:$8 sm:$0xf]
  %s323 = scalar_lea.vmem %s0, 453
  %v324 = vld [vmem:[%s323] ss:$8 sm:$0xf0]
  %vm325 = vcmask 1047556
  %v326 = vsel %vm325, %v324, %v322
  %327 = vrot.lane.b32.xlu0 %v326, 40
  %v328 = vpop.permute.xlu0 %327
  %vm329 = vcmask 392512
  %s330 = scalar_lea.vmem %s1, 56
  %331 = vst.msk [vmem:[%s330] sm:$0xff] %vm329, %v328
  %s332 = scalar_lea.vmem %s0, 4
  %v333 = vld [vmem:[%s332] ss:$8 sm:$0xf]
  %s334 = scalar_lea.vmem %s0, 4
  %v335 = vld [vmem:[%s334] ss:$8 sm:$0xf0]
  %vm336 = vcmask 1047556
  %v337 = vsel %vm336, %v335, %v333
  %338 = vrot.lane.b32.xlu0 %v337, 32
  %v339 = vpop.permute.xlu0 %338
  %vm340 = vcmask 326912
  %341 = vst.msk [vmem:[%s1] sm:$0xff] %vm340, %v339
  %s342 = scalar_lea.vmem %s0, 260
  %v343 = vld [vmem:[%s342] ss:$8 sm:$0xf]
  %s344 = scalar_lea.vmem %s0, 260
  %v345 = vld [vmem:[%s344] ss:$8 sm:$0xf0]
  %vm346 = vcmask 1047556
  %v347 = vsel %vm346, %v345, %v343
  %348 = vrot.lane.b32.xlu0 %v347, 32
  %v349 = vpop.permute.xlu0 %348
  %vm350 = vcmask 326912
  %s351 = scalar_lea.vmem %s1, 32
  %352 = vst.msk [vmem:[%s351] sm:$0xff] %vm350, %v349
  %s353 = scalar_lea.vmem %s0, 68
  %v354 = vld [vmem:[%s353] ss:$8 sm:$0xf]
  %s355 = scalar_lea.vmem %s0, 68
  %v356 = vld [vmem:[%s355] ss:$8 sm:$0xf0]
  %vm357 = vcmask 1047556
  %v358 = vsel %vm357, %v356, %v354
  %359 = vrot.lane.b32.xlu0 %v358, 32
  %v360 = vpop.permute.xlu0 %359
  %vm361 = vcmask 326912
  %s362 = scalar_lea.vmem %s1, 8
  %363 = vst.msk [vmem:[%s362] sm:$0xff] %vm361, %v360
  %s364 = scalar_lea.vmem %s0, 324
  %v365 = vld [vmem:[%s364] ss:$8 sm:$0xf]
  %s366 = scalar_lea.vmem %s0, 324
  %v367 = vld [vmem:[%s366] ss:$8 sm:$0xf0]
  %vm368 = vcmask 1047556
  %v369 = vsel %vm368, %v367, %v365
  %370 = vrot.lane.b32.xlu0 %v369, 32
  %v371 = vpop.permute.xlu0 %370
  %vm372 = vcmask 326912
  %s373 = scalar_lea.vmem %s1, 40
  %374 = vst.msk [vmem:[%s373] sm:$0xff] %vm372, %v371
  %s375 = scalar_lea.vmem %s0, 132
  %v376 = vld [vmem:[%s375] ss:$8 sm:$0xf]
  %s377 = scalar_lea.vmem %s0, 132
  %v378 = vld [vmem:[%s377] ss:$8 sm:$0xf0]
  %vm379 = vcmask 1047556
  %v380 = vsel %vm379, %v378, %v376
  %381 = vrot.lane.b32.xlu0 %v380, 32
  %v382 = vpop.permute.xlu0 %381
  %vm383 = vcmask 326912
  %s384 = scalar_lea.vmem %s1, 16
  %385 = vst.msk [vmem:[%s384] sm:$0xff] %vm383, %v382
  %s386 = scalar_lea.vmem %s0, 388
  %v387 = vld [vmem:[%s386] ss:$8 sm:$0xf]
  %s388 = scalar_lea.vmem %s0, 388
  %v389 = vld [vmem:[%s388] ss:$8 sm:$0xf0]
  %vm390 = vcmask 1047556
  %v391 = vsel %vm390, %v389, %v387
  %392 = vrot.lane.b32.xlu0 %v391, 32
  %v393 = vpop.permute.xlu0 %392
  %vm394 = vcmask 326912
  %s395 = scalar_lea.vmem %s1, 48
  %396 = vst.msk [vmem:[%s395] sm:$0xff] %vm394, %v393
  %s397 = scalar_lea.vmem %s0, 196
  %v398 = vld [vmem:[%s397] ss:$8 sm:$0xf]
  %s399 = scalar_lea.vmem %s0, 196
  %v400 = vld [vmem:[%s399] ss:$8 sm:$0xf0]
  %vm401 = vcmask 1047556
  %v402 = vsel %vm401, %v400, %v398
  %403 = vrot.lane.b32.xlu0 %v402, 32
  %v404 = vpop.permute.xlu0 %403
  %vm405 = vcmask 326912
  %s406 = scalar_lea.vmem %s1, 24
  %407 = vst.msk [vmem:[%s406] sm:$0xff] %vm405, %v404
  %s408 = scalar_lea.vmem %s0, 452
  %v409 = vld [vmem:[%s408] ss:$8 sm:$0xf]
  %s410 = scalar_lea.vmem %s0, 452
  %v411 = vld [vmem:[%s410] ss:$8 sm:$0xf0]
  %vm412 = vcmask 1047556
  %v413 = vsel %vm412, %v411, %v409
  %414 = vrot.lane.b32.xlu0 %v413, 32
  %v415 = vpop.permute.xlu0 %414
  %vm416 = vcmask 326912
  %s417 = scalar_lea.vmem %s1, 56
  %418 = vst.msk [vmem:[%s417] sm:$0xff] %vm416, %v415
  %s419 = scalar_lea.vmem %s0, 3
  %v420 = vld [vmem:[%s419] ss:$8 sm:$0xf]
  %s421 = scalar_lea.vmem %s0, 3
  %v422 = vld [vmem:[%s421] ss:$8 sm:$0xf0]
  %vm423 = vcmask 1047556
  %v424 = vsel %vm423, %v422, %v420
  %425 = vrot.lane.b32.xlu0 %v424, 24
  %v426 = vpop.permute.xlu0 %425
  %vm427 = vcmask 261312
  %428 = vst.msk [vmem:[%s1] sm:$0xff] %vm427, %v426
  %s429 = scalar_lea.vmem %s0, 259
  %v430 = vld [vmem:[%s429] ss:$8 sm:$0xf]
  %s431 = scalar_lea.vmem %s0, 259
  %v432 = vld [vmem:[%s431] ss:$8 sm:$0xf0]
  %vm433 = vcmask 1047556
  %v434 = vsel %vm433, %v432, %v430
  %435 = vrot.lane.b32.xlu0 %v434, 24
  %v436 = vpop.permute.xlu0 %435
  %vm437 = vcmask 261312
  %s438 = scalar_lea.vmem %s1, 32
  %439 = vst.msk [vmem:[%s438] sm:$0xff] %vm437, %v436
  %s440 = scalar_lea.vmem %s0, 67
  %v441 = vld [vmem:[%s440] ss:$8 sm:$0xf]
  %s442 = scalar_lea.vmem %s0, 67
  %v443 = vld [vmem:[%s442] ss:$8 sm:$0xf0]
  %vm444 = vcmask 1047556
  %v445 = vsel %vm444, %v443, %v441
  %446 = vrot.lane.b32.xlu0 %v445, 24
  %v447 = vpop.permute.xlu0 %446
  %vm448 = vcmask 261312
  %s449 = scalar_lea.vmem %s1, 8
  %450 = vst.msk [vmem:[%s449] sm:$0xff] %vm448, %v447
  %s451 = scalar_lea.vmem %s0, 323
  %v452 = vld [vmem:[%s451] ss:$8 sm:$0xf]
  %s453 = scalar_lea.vmem %s0, 323
  %v454 = vld [vmem:[%s453] ss:$8 sm:$0xf0]
  %vm455 = vcmask 1047556
  %v456 = vsel %vm455, %v454, %v452
  %457 = vrot.lane.b32.xlu0 %v456, 24
  %v458 = vpop.permute.xlu0 %457
  %vm459 = vcmask 261312
  %s460 = scalar_lea.vmem %s1, 40
  %461 = vst.msk [vmem:[%s460] sm:$0xff] %vm459, %v458
  %s462 = scalar_lea.vmem %s0, 131
  %v463 = vld [vmem:[%s462] ss:$8 sm:$0xf]
  %s464 = scalar_lea.vmem %s0, 131
  %v465 = vld [vmem:[%s464] ss:$8 sm:$0xf0]
  %vm466 = vcmask 1047556
  %v467 = vsel %vm466, %v465, %v463
  %468 = vrot.lane.b32.xlu0 %v467, 24
  %v469 = vpop.permute.xlu0 %468
  %vm470 = vcmask 261312
  %s471 = scalar_lea.vmem %s1, 16
  %472 = vst.msk [vmem:[%s471] sm:$0xff] %vm470, %v469
  %s473 = scalar_lea.vmem %s0, 387
  %v474 = vld [vmem:[%s473] ss:$8 sm:$0xf]
  %s475 = scalar_lea.vmem %s0, 387
  %v476 = vld [vmem:[%s475] ss:$8 sm:$0xf0]
  %vm477 = vcmask 1047556
  %v478 = vsel %vm477, %v476, %v474
  %479 = vrot.lane.b32.xlu0 %v478, 24
  %v480 = vpop.permute.xlu0 %479
  %vm481 = vcmask 261312
  %s482 = scalar_lea.vmem %s1, 48
  %483 = vst.msk [vmem:[%s482] sm:$0xff] %vm481, %v480
  %s484 = scalar_lea.vmem %s0, 195
  %v485 = vld [vmem:[%s484] ss:$8 sm:$0xf]
  %s486 = scalar_lea.vmem %s0, 195
  %v487 = vld [vmem:[%s486] ss:$8 sm:$0xf0]
  %vm488 = vcmask 1047556
  %v489 = vsel %vm488, %v487, %v485
  %490 = vrot.lane.b32.xlu0 %v489, 24
  %v491 = vpop.permute.xlu0 %490
  %vm492 = vcmask 261312
  %s493 = scalar_lea.vmem %s1, 24
  %494 = vst.msk [vmem:[%s493] sm:$0xff] %vm492, %v491
  %s495 = scalar_lea.vmem %s0, 451
  %v496 = vld [vmem:[%s495] ss:$8 sm:$0xf]
  %s497 = scalar_lea.vmem %s0, 451
  %v498 = vld [vmem:[%s497] ss:$8 sm:$0xf0]
  %vm499 = vcmask 1047556
  %v500 = vsel %vm499, %v498, %v496
  %501 = vrot.lane.b32.xlu0 %v500, 24
  %v502 = vpop.permute.xlu0 %501
  %vm503 = vcmask 261312
  %s504 = scalar_lea.vmem %s1, 56
  %505 = vst.msk [vmem:[%s504] sm:$0xff] %vm503, %v502
  %s506 = scalar_lea.vmem %s0, 2
  %v507 = vld [vmem:[%s506] ss:$8 sm:$0xf]
  %s508 = scalar_lea.vmem %s0, 2
  %v509 = vld [vmem:[%s508] ss:$8 sm:$0xf0]
  %vm510 = vcmask 1047556
  %v511 = vsel %vm510, %v509, %v507
  %512 = vrot.lane.b32.xlu0 %v511, 16
  %v513 = vpop.permute.xlu0 %512
  %vm514 = vcmask 195712
  %515 = vst.msk [vmem:[%s1] sm:$0xff] %vm514, %v513
  %s516 = scalar_lea.vmem %s0, 258
  %v517 = vld [vmem:[%s516] ss:$8 sm:$0xf]
  %s518 = scalar_lea.vmem %s0, 258
  %v519 = vld [vmem:[%s518] ss:$8 sm:$0xf0]
  %vm520 = vcmask 1047556
  %v521 = vsel %vm520, %v519, %v517
  %522 = vrot.lane.b32.xlu0 %v521, 16
  %v523 = vpop.permute.xlu0 %522
  %vm524 = vcmask 195712
  %s525 = scalar_lea.vmem %s1, 32
  %526 = vst.msk [vmem:[%s525] sm:$0xff] %vm524, %v523
  %s527 = scalar_lea.vmem %s0, 66
  %v528 = vld [vmem:[%s527] ss:$8 sm:$0xf]
  %s529 = scalar_lea.vmem %s0, 66
  %v530 = vld [vmem:[%s529] ss:$8 sm:$0xf0]
  %vm531 = vcmask 1047556
  %v532 = vsel %vm531, %v530, %v528
  %533 = vrot.lane.b32.xlu0 %v532, 16
  %v534 = vpop.permute.xlu0 %533
  %vm535 = vcmask 195712
  %s536 = scalar_lea.vmem %s1, 8
  %537 = vst.msk [vmem:[%s536] sm:$0xff] %vm535, %v534
  %s538 = scalar_lea.vmem %s0, 322
  %v539 = vld [vmem:[%s538] ss:$8 sm:$0xf]
  %s540 = scalar_lea.vmem %s0, 322
  %v541 = vld [vmem:[%s540] ss:$8 sm:$0xf0]
  %vm542 = vcmask 1047556
  %v543 = vsel %vm542, %v541, %v539
  %544 = vrot.lane.b32.xlu0 %v543, 16
  %v545 = vpop.permute.xlu0 %544
  %vm546 = vcmask 195712
  %s547 = scalar_lea.vmem %s1, 40
  %548 = vst.msk [vmem:[%s547] sm:$0xff] %vm546, %v545
  %s549 = scalar_lea.vmem %s0, 130
  %v550 = vld [vmem:[%s549] ss:$8 sm:$0xf]
  %s551 = scalar_lea.vmem %s0, 130
  %v552 = vld [vmem:[%s551] ss:$8 sm:$0xf0]
  %vm553 = vcmask 1047556
  %v554 = vsel %vm553, %v552, %v550
  %555 = vrot.lane.b32.xlu0 %v554, 16
  %v556 = vpop.permute.xlu0 %555
  %vm557 = vcmask 195712
  %s558 = scalar_lea.vmem %s1, 16
  %559 = vst.msk [vmem:[%s558] sm:$0xff] %vm557, %v556
  %s560 = scalar_lea.vmem %s0, 386
  %v561 = vld [vmem:[%s560] ss:$8 sm:$0xf]
  %s562 = scalar_lea.vmem %s0, 386
  %v563 = vld [vmem:[%s562] ss:$8 sm:$0xf0]
  %vm564 = vcmask 1047556
  %v565 = vsel %vm564, %v563, %v561
  %566 = vrot.lane.b32.xlu0 %v565, 16
  %v567 = vpop.permute.xlu0 %566
  %vm568 = vcmask 195712
  %s569 = scalar_lea.vmem %s1, 48
  %570 = vst.msk [vmem:[%s569] sm:$0xff] %vm568, %v567
  %s571 = scalar_lea.vmem %s0, 194
  %v572 = vld [vmem:[%s571] ss:$8 sm:$0xf]
  %s573 = scalar_lea.vmem %s0, 194
  %v574 = vld [vmem:[%s573] ss:$8 sm:$0xf0]
  %vm575 = vcmask 1047556
  %v576 = vsel %vm575, %v574, %v572
  %577 = vrot.lane.b32.xlu0 %v576, 16
  %v578 = vpop.permute.xlu0 %577
  %vm579 = vcmask 195712
  %s580 = scalar_lea.vmem %s1, 24
  %581 = vst.msk [vmem:[%s580] sm:$0xff] %vm579, %v578
  %s582 = scalar_lea.vmem %s0, 450
  %v583 = vld [vmem:[%s582] ss:$8 sm:$0xf]
  %s584 = scalar_lea.vmem %s0, 450
  %v585 = vld [vmem:[%s584] ss:$8 sm:$0xf0]
  %vm586 = vcmask 1047556
  %v587 = vsel %vm586, %v585, %v583
  %588 = vrot.lane.b32.xlu0 %v587, 16
  %v589 = vpop.permute.xlu0 %588
  %vm590 = vcmask 195712
  %s591 = scalar_lea.vmem %s1, 56
  %592 = vst.msk [vmem:[%s591] sm:$0xff] %vm590, %v589
  %s593 = scalar_lea.vmem %s0, 1
  %v594 = vld [vmem:[%s593] ss:$8 sm:$0xf]
  %s595 = scalar_lea.vmem %s0, 1
  %v596 = vld [vmem:[%s595] ss:$8 sm:$0xf0]
  %vm597 = vcmask 1047556
  %v598 = vsel %vm597, %v596, %v594
  %599 = vrot.lane.b32.xlu0 %v598, 8
  %v600 = vpop.permute.xlu0 %599
  %vm601 = vcmask 130112
  %602 = vst.msk [vmem:[%s1] sm:$0xff] %vm601, %v600
  %s603 = scalar_lea.vmem %s0, 257
  %v604 = vld [vmem:[%s603] ss:$8 sm:$0xf]
  %s605 = scalar_lea.vmem %s0, 257
  %v606 = vld [vmem:[%s605] ss:$8 sm:$0xf0]
  %vm607 = vcmask 1047556
  %v608 = vsel %vm607, %v606, %v604
  %609 = vrot.lane.b32.xlu0 %v608, 8
  %v610 = vpop.permute.xlu0 %609
  %vm611 = vcmask 130112
  %s612 = scalar_lea.vmem %s1, 32
  %613 = vst.msk [vmem:[%s612] sm:$0xff] %vm611, %v610
  %s614 = scalar_lea.vmem %s0, 65
  %v615 = vld [vmem:[%s614] ss:$8 sm:$0xf]
  %s616 = scalar_lea.vmem %s0, 65
  %v617 = vld [vmem:[%s616] ss:$8 sm:$0xf0]
  %vm618 = vcmask 1047556
  %v619 = vsel %vm618, %v617, %v615
  %620 = vrot.lane.b32.xlu0 %v619, 8
  %v621 = vpop.permute.xlu0 %620
  %vm622 = vcmask 130112
  %s623 = scalar_lea.vmem %s1, 8
  %624 = vst.msk [vmem:[%s623] sm:$0xff] %vm622, %v621
  %s625 = scalar_lea.vmem %s0, 321
  %v626 = vld [vmem:[%s625] ss:$8 sm:$0xf]
  %s627 = scalar_lea.vmem %s0, 321
  %v628 = vld [vmem:[%s627] ss:$8 sm:$0xf0]
  %vm629 = vcmask 1047556
  %v630 = vsel %vm629, %v628, %v626
  %631 = vrot.lane.b32.xlu0 %v630, 8
  %v632 = vpop.permute.xlu0 %631
  %vm633 = vcmask 130112
  %s634 = scalar_lea.vmem %s1, 40
  %635 = vst.msk [vmem:[%s634] sm:$0xff] %vm633, %v632
  %s636 = scalar_lea.vmem %s0, 129
  %v637 = vld [vmem:[%s636] ss:$8 sm:$0xf]
  %s638 = scalar_lea.vmem %s0, 129
  %v639 = vld [vmem:[%s638] ss:$8 sm:$0xf0]
  %vm640 = vcmask 1047556
  %v641 = vsel %vm640, %v639, %v637
  %642 = vrot.lane.b32.xlu0 %v641, 8
  %v643 = vpop.permute.xlu0 %642
  %vm644 = vcmask 130112
  %s645 = scalar_lea.vmem %s1, 16
  %646 = vst.msk [vmem:[%s645] sm:$0xff] %vm644, %v643
  %s647 = scalar_lea.vmem %s0, 385
  %v648 = vld [vmem:[%s647] ss:$8 sm:$0xf]
  %s649 = scalar_lea.vmem %s0, 385
  %v650 = vld [vmem:[%s649] ss:$8 sm:$0xf0]
  %vm651 = vcmask 1047556
  %v652 = vsel %vm651, %v650, %v648
  %653 = vrot.lane.b32.xlu0 %v652, 8
  %v654 = vpop.permute.xlu0 %653
  %vm655 = vcmask 130112
  %s656 = scalar_lea.vmem %s1, 48
  %657 = vst.msk [vmem:[%s656] sm:$0xff] %vm655, %v654
  %s658 = scalar_lea.vmem %s0, 193
  %v659 = vld [vmem:[%s658] ss:$8 sm:$0xf]
  %s660 = scalar_lea.vmem %s0, 193
  %v661 = vld [vmem:[%s660] ss:$8 sm:$0xf0]
  %vm662 = vcmask 1047556
  %v663 = vsel %vm662, %v661, %v659
  %664 = vrot.lane.b32.xlu0 %v663, 8
  %v665 = vpop.permute.xlu0 %664
  %vm666 = vcmask 130112
  %s667 = scalar_lea.vmem %s1, 24
  %668 = vst.msk [vmem:[%s667] sm:$0xff] %vm666, %v665
  %s669 = scalar_lea.vmem %s0, 449
  %v670 = vld [vmem:[%s669] ss:$8 sm:$0xf]
  %s671 = scalar_lea.vmem %s0, 449
  %v672 = vld [vmem:[%s671] ss:$8 sm:$0xf0]
  %vm673 = vcmask 1047556
  %v674 = vsel %vm673, %v672, %v670
  %675 = vrot.lane.b32.xlu0 %v674, 8
  %v676 = vpop.permute.xlu0 %675
  %vm677 = vcmask 130112
  %s678 = scalar_lea.vmem %s1, 56
  %679 = vst.msk [vmem:[%s678] sm:$0xff] %vm677, %v676

// kernel: conv_transpose2_1d.1
$region0: #{conv_transpose2_1d.1}
  #allocation0 [shape = 'u32[]', space=smem, size = 0x4, offset = 0x4, fixed_abs, tag = 'smem constant byte address 0x4 - core index']
  #allocation1 [shape = 'u32[144,128]{1,0:T(1,128)}', space=vmem, size = 0x12000, scoped, tag = 'internal scratch']
  %s0 = inlined_call_operand.hbm [shape: f32[32,256], index: 0, kind: input, shape index: {}]
  %s1 = inlined_call_operand.hbm [shape: bf16[256,32], index: 1, kind: input, shape index: {}]
  %s2 = inlined_call_operand.hbm [shape: f32[256,1], index: 2, kind: input, shape index: {}]
  %s3 = inlined_call_operand.hbm [shape: bf16[256,256], index: 3, kind: input, shape index: {}]
  %s4 = inlined_call_operand.hbm [shape: f32[256,1], index: 4, kind: input, shape index: {}]
  %s5 = inlined_call_operand.hbm [shape: f32[256,256], index: 5, kind: output, shape index: {}]
  %s6 = sld [smem:[#allocation0]]
  $region50: #{conv_transpose2_1d.1} parent=0
    _
  %s8 = ssub.s32 1, %s6
  %s9 = scalar_select 0, %s8, %s6
  $region1: #{conv_transpose2_1d.1} parent=0
    #allocation2 [shape = 'u8[32768]{0}', space=vmem, size = 0x8000, scoped, tag = 'input window, operand 0, single buffered']
    #allocation3 [shape = 's32[1]{0}', space=sflag, size = 0x4, scoped, tag = 'scoped memory for conv_transpose2_1d.1']
    #allocation4 [shape = 's32[1]{0}', space=sflag, size = 0x4, scoped, tag = 'scoped memory for conv_transpose2_1d.1']
    #allocation5 [shape = 'u8[65536]{0}', space=vmem, size = 0x10000, scoped, tag = 'input window, operand 1, single buffered']
    #allocation6 [shape = 's32[1]{0}', space=sflag, size = 0x4, scoped, tag = 'scoped memory for conv_transpose2_1d.1']
    #allocation7 [shape = 'u8[131072]{0}', space=vmem, size = 0x20000, scoped, tag = 'input window, operand 2, single buffered']
    #allocation8 [shape = 'u8[131072]{0}', space=vmem, size = 0x20000, scoped, tag = 'input window, operand 3, single buffered']
    #allocation9 [shape = 's32[1]{0}', space=sflag, size = 0x4, scoped, tag = 'scoped memory for conv_transpose2_1d.1']
    #allocation10 [shape = 'u8[131072]{0}', space=vmem, size = 0x20000, scoped, tag = 'input window, operand 4, single buffered']
    #allocation11 [shape = 'u8[262144]{0}', space=vmem, size = 0x40000, scoped, tag = 'output window, operand 0, single buffered']
    %10 = vsyncpa [#allocation3], 0
    %11 = vsyncpa [#allocation6], 0
    %12 = vsyncpa [#allocation9], 0
    %13 = vsyncpa [#allocation4], 0
    // Predicated region
    $region2: #{conv_transpose2_1d.1} parent=1 // pred_check
      _
    $region3: #{conv_transpose2_1d.1} parent=1 // pred_check_branch
      %15 = sbr.rel (0) target = $region5
    $region4: #{conv_transpose2_1d.1} parent=1 // pred_region
      %s17 = ssub.s32 1024, 1024
      %18 = vsyncadd [#allocation3], %s17
      %s19 = sshll.u32 [#allocation2], 4
      %s20 = int_to_ptr.vmem [resolvable:$true] %s19
      %25 = dma.hbm_to_vmem [thread:$0]  %s0, 1024, %s20, [#allocation3], 256, 256, 16
    $region5: #{conv_transpose2_1d.1} parent=1 // pred_fallthru
      _
    // Predicated region
    $region6: #{conv_transpose2_1d.1} parent=1 // pred_check
      _
    $region7: #{conv_transpose2_1d.1} parent=1 // pred_check_branch
      %27 = sbr.rel (0) target = $region9
    $region8: #{conv_transpose2_1d.1} parent=1 // pred_region
      %s29 = ssub.s32 2048, 2048
      %30 = vsyncadd [#allocation6], %s29
      %s31 = sshll.u32 [#allocation5], 4
      %s32 = int_to_ptr.vmem [resolvable:$true] %s31
      %37 = dma.hbm_to_vmem [thread:$0]  %s1, 2048, %s32, [#allocation6], 64, 64, 4
    $region9: #{conv_transpose2_1d.1} parent=1 // pred_fallthru
      _
    // Predicated region
    $region10: #{conv_transpose2_1d.1} parent=1 // pred_check
      _
    $region11: #{conv_transpose2_1d.1} parent=1 // pred_check_branch
      %39 = sbr.rel (0) target = $region13
    $region12: #{conv_transpose2_1d.1} parent=1 // pred_region
      %s41 = ssub.s32 4096, 4096
      %42 = vsyncadd [#allocation6], %s41
      %s43 = sshll.u32 [#allocation7], 4
      %s44 = int_to_ptr.vmem [resolvable:$true] %s43
      %49 = dma.hbm_to_vmem [thread:$0]  %s2, 4096, %s44, [#allocation6], 128, 128, 8
    $region13: #{conv_transpose2_1d.1} parent=1 // pred_fallthru
      _
    // Predicated region
    $region14: #{conv_transpose2_1d.1} parent=1 // pred_check
      _
    $region15: #{conv_transpose2_1d.1} parent=1 // pred_check_branch
      %51 = sbr.rel (0) target = $region17
    $region16: #{conv_transpose2_1d.1} parent=1 // pred_region
      %s53 = ssub.s32 4096, 4096
      %54 = vsyncadd [#allocation9], %s53
      %s55 = sshll.u32 [#allocation8], 4
      %s56 = int_to_ptr.vmem [resolvable:$true] %s55
      %61 = dma.hbm_to_vmem [thread:$0]  %s3, 4096, %s56, [#allocation9], 128, 128, 8
    $region17: #{conv_transpose2_1d.1} parent=1 // pred_fallthru
      _
    // Predicated region
    $region18: #{conv_transpose2_1d.1} parent=1 // pred_check
      _
    $region19: #{conv_transpose2_1d.1} parent=1 // pred_check_branch
      %63 = sbr.rel (0) target = $region21
    $region20: #{conv_transpose2_1d.1} parent=1 // pred_region
      %s65 = ssub.s32 4096, 4096
      %66 = vsyncadd [#allocation9], %s65
      %s67 = sshll.u32 [#allocation10], 4
      %s68 = int_to_ptr.vmem [resolvable:$true] %s67
      %73 = dma.hbm_to_vmem [thread:$0]  %s4, 4096, %s68, [#allocation9], 128, 128, 8
    $region21: #{conv_transpose2_1d.1} parent=1 // pred_fallthru
      _
    // Predicated region
    $region22: #{conv_transpose2_1d.1} parent=1 // pred_check
      _
    $region23: #{conv_transpose2_1d.1} parent=1 // pred_check_branch
      %75 = sbr.rel (0) target = $region25
    $region24: #{conv_transpose2_1d.1} parent=1 // pred_region
      %76 = dma.done [#allocation3], 1024
    $region25: #{conv_transpose2_1d.1} parent=1 // pred_fallthru
      _
    // Predicated region
    $region26: #{conv_transpose2_1d.1} parent=1 // pred_check
      _
    $region27: #{conv_transpose2_1d.1} parent=1 // pred_check_branch
      %78 = sbr.rel (0) target = $region29
    $region28: #{conv_transpose2_1d.1} parent=1 // pred_region
      %79 = dma.done [#allocation6], 2048
    $region29: #{conv_transpose2_1d.1} parent=1 // pred_fallthru
      _
    // Predicated region
    $region30: #{conv_transpose2_1d.1} parent=1 // pred_check
      _
    $region31: #{conv_transpose2_1d.1} parent=1 // pred_check_branch
      %81 = sbr.rel (0) target = $region33
    $region32: #{conv_transpose2_1d.1} parent=1 // pred_region
      %82 = dma.done [#allocation6], 4096
    $region33: #{conv_transpose2_1d.1} parent=1 // pred_fallthru
      _
    // Predicated region
    $region34: #{conv_transpose2_1d.1} parent=1 // pred_check
      _
    $region35: #{conv_transpose2_1d.1} parent=1 // pred_check_branch
      %84 = sbr.rel (0) target = $region37
    $region36: #{conv_transpose2_1d.1} parent=1 // pred_region
      %85 = dma.done [#allocation9], 4096
    $region37: #{conv_transpose2_1d.1} parent=1 // pred_fallthru
      _
    // Predicated region
    $region38: #{conv_transpose2_1d.1} parent=1 // pred_check
      _
    $region39: #{conv_transpose2_1d.1} parent=1 // pred_check_branch
      %87 = sbr.rel (0) target = $region41
    $region40: #{conv_transpose2_1d.1} parent=1 // pred_region
      %88 = dma.done [#allocation9], 4096
    $region41: #{conv_transpose2_1d.1} parent=1 // pred_fallthru
      _
    %v90 = vld [vmem:[#allocation2] sm:$0xff]
    %v91 = vld [vmem:[#allocation2 + $0x8] sm:$0xff]
    %v92 = vld [vmem:[#allocation2 + $0x10] sm:$0xff]
    %v93 = vld [vmem:[#allocation2 + $0x18] sm:$0xff]
    %v94 = vld [vmem:[#allocation2 + $0x20] sm:$0xff]
    %v95 = vld [vmem:[#allocation2 + $0x28] sm:$0xff]
    %v96 = vld [vmem:[#allocation2 + $0x30] sm:$0xff]
    %v97 = vld [vmem:[#allocation2 + $0x38] sm:$0xff]
    %v98 = vpack.c.bf16 %v92, %v90
    %v99 = vpack.c.bf16 %v93, %v91
    %v100 = vpack.c.bf16 %v96, %v94
    %v101 = vpack.c.bf16 %v97, %v95
    %v102 = vld [vmem:[#allocation5] sm:$0xf]
    %v103 = vld [vmem:[#allocation5 + $0x4] sm:$0xf]
    %v104 = vld [vmem:[#allocation5 + $0x8] sm:$0xf]
    %v105 = vld [vmem:[#allocation5 + $0xc] sm:$0xf]
    %v106 = vld [vmem:[#allocation5 + $0x10] sm:$0xf]
    %v107 = vld [vmem:[#allocation5 + $0x14] sm:$0xf]
    %v108 = vld [vmem:[#allocation5 + $0x18] sm:$0xf]
    %v109 = vld [vmem:[#allocation5 + $0x1c] sm:$0xf]
    %v110 = vld [vmem:[#allocation5 + $0x20] sm:$0xf]
    %v111 = vld [vmem:[#allocation5 + $0x24] sm:$0xf]
    %v112 = vld [vmem:[#allocation5 + $0x28] sm:$0xf]
    %v113 = vld [vmem:[#allocation5 + $0x2c] sm:$0xf]
    %v114 = vld [vmem:[#allocation5 + $0x30] sm:$0xf]
    %v115 = vld [vmem:[#allocation5 + $0x34] sm:$0xf]
    %v116 = vld [vmem:[#allocation5 + $0x38] sm:$0xf]
    %v117 = vld [vmem:[#allocation5 + $0x3c] sm:$0xf]
    %v118 = vld [vmem:[#allocation5 + $0x40] sm:$0xf]
    %v119 = vld [vmem:[#allocation5 + $0x44] sm:$0xf]
    %v120 = vld [vmem:[#allocation5 + $0x48] sm:$0xf]
    %v121 = vld [vmem:[#allocation5 + $0x4c] sm:$0xf]
    %v122 = vld [vmem:[#allocation5 + $0x50] sm:$0xf]
    %v123 = vld [vmem:[#allocation5 + $0x54] sm:$0xf]
    %v124 = vld [vmem:[#allocation5 + $0x58] sm:$0xf]
    %v125 = vld [vmem:[#allocation5 + $0x5c] sm:$0xf]
    %v126 = vld [vmem:[#allocation5 + $0x60] sm:$0xf]
    %v127 = vld [vmem:[#allocation5 + $0x64] sm:$0xf]
    %v128 = vld [vmem:[#allocation5 + $0x68] sm:$0xf]
    %v129 = vld [vmem:[#allocation5 + $0x6c] sm:$0xf]
    %v130 = vld [vmem:[#allocation5 + $0x70] sm:$0xf]
    %v131 = vld [vmem:[#allocation5 + $0x74] sm:$0xf]
    %v132 = vld [vmem:[#allocation5 + $0x78] sm:$0xf]
    %v133 = vld [vmem:[#allocation5 + $0x7c] sm:$0xf]
    %v134 = vld [vmem:[#allocation7] sm:$0xff]
    %v135 = vld [vmem:[#allocation7 + $0x8] sm:$0xff]
    %v136 = vld [vmem:[#allocation7 + $0x10] sm:$0xff]
    %v137 = vld [vmem:[#allocation7 + $0x18] sm:$0xff]
    %v138 = vld [vmem:[#allocation7 + $0x20] sm:$0xff]
    %v139 = vld [vmem:[#allocation7 + $0x28] sm:$0xff]
    %v140 = vld [vmem:[#allocation7 + $0x30] sm:$0xff]
    %v141 = vld [vmem:[#allocation7 + $0x38] sm:$0xff]
    %v142 = vld [vmem:[#allocation7 + $0x40] sm:$0xff]
    %v143 = vld [vmem:[#allocation7 + $0x48] sm:$0xff]
    %v144 = vld [vmem:[#allocation7 + $0x50] sm:$0xff]
    %v145 = vld [vmem:[#allocation7 + $0x58] sm:$0xff]
    %v146 = vld [vmem:[#allocation7 + $0x60] sm:$0xff]
    %v147 = vld [vmem:[#allocation7 + $0x68] sm:$0xff]
    %v148 = vld [vmem:[#allocation7 + $0x70] sm:$0xff]
    %v149 = vld [vmem:[#allocation7 + $0x78] sm:$0xff]
    %v150 = vld [vmem:[#allocation7 + $0x80] sm:$0xff]
    %v151 = vld [vmem:[#allocation7 + $0x88] sm:$0xff]
    %v152 = vld [vmem:[#allocation7 + $0x90] sm:$0xff]
    %v153 = vld [vmem:[#allocation7 + $0x98] sm:$0xff]
    %v154 = vld [vmem:[#allocation7 + $0xa0] sm:$0xff]
    %v155 = vld [vmem:[#allocation7 + $0xa8] sm:$0xff]
    %v156 = vld [vmem:[#allocation7 + $0xb0] sm:$0xff]
    %v157 = vld [vmem:[#allocation7 + $0xb8] sm:$0xff]
    %v158 = vld [vmem:[#allocation7 + $0xc0] sm:$0xff]
    %v159 = vld [vmem:[#allocation7 + $0xc8] sm:$0xff]
    %v160 = vld [vmem:[#allocation7 + $0xd0] sm:$0xff]
    %v161 = vld [vmem:[#allocation7 + $0xd8] sm:$0xff]
    %v162 = vld [vmem:[#allocation7 + $0xe0] sm:$0xff]
    %v163 = vld [vmem:[#allocation7 + $0xe8] sm:$0xff]
    %v164 = vld [vmem:[#allocation7 + $0xf0] sm:$0xff]
    %v165 = vld [vmem:[#allocation7 + $0xf8] sm:$0xff]
    %167 = vset.pattern.permute.xlu0 0
    %168 = vperm.xlu0 %167, %v134
    %v169 = vpop.permute.xlu0 %168
    %172 = vset.pattern.permute.xlu0 0
    %173 = vperm.xlu0 %172, %v135
    %v174 = vpop.permute.xlu0 %173
    %177 = vset.pattern.permute.xlu0 0
    %178 = vperm.xlu0 %177, %v136
    %v179 = vpop.permute.xlu0 %178
    %182 = vset.pattern.permute.xlu0 0
    %183 = vperm.xlu0 %182, %v137
    %v184 = vpop.permute.xlu0 %183
    %187 = vset.pattern.permute.xlu0 0
    %188 = vperm.xlu0 %187, %v138
    %v189 = vpop.permute.xlu0 %188
    %192 = vset.pattern.permute.xlu0 0
    %193 = vperm.xlu0 %192, %v139
    %v194 = vpop.permute.xlu0 %193
    %197 = vset.pattern.permute.xlu0 0
    %198 = vperm.xlu0 %197, %v140
    %v199 = vpop.permute.xlu0 %198
    %202 = vset.pattern.permute.xlu0 0
    %203 = vperm.xlu0 %202, %v141
    %v204 = vpop.permute.xlu0 %203
    %207 = vset.pattern.permute.xlu0 0
    %208 = vperm.xlu0 %207, %v142
    %v209 = vpop.permute.xlu0 %208
    %212 = vset.pattern.permute.xlu0 0
    %213 = vperm.xlu0 %212, %v143
    %v214 = vpop.permute.xlu0 %213
    %217 = vset.pattern.permute.xlu0 0
    %218 = vperm.xlu0 %217, %v144
    %v219 = vpop.permute.xlu0 %218
    %222 = vset.pattern.permute.xlu0 0
    %223 = vperm.xlu0 %222, %v145
    %v224 = vpop.permute.xlu0 %223
    %227 = vset.pattern.permute.xlu0 0
    %228 = vperm.xlu0 %227, %v146
    %v229 = vpop.permute.xlu0 %228
    %232 = vset.pattern.permute.xlu0 0
    %233 = vperm.xlu0 %232, %v147
    %v234 = vpop.permute.xlu0 %233
    %237 = vset.pattern.permute.xlu0 0
    %238 = vperm.xlu0 %237, %v148
    %v239 = vpop.permute.xlu0 %238
    %242 = vset.pattern.permute.xlu0 0
    %243 = vperm.xlu0 %242, %v149
    %v244 = vpop.permute.xlu0 %243
    %247 = vset.pattern.permute.xlu0 0
    %248 = vperm.xlu0 %247, %v150
    %v249 = vpop.permute.xlu0 %248
    %252 = vset.pattern.permute.xlu0 0
    %253 = vperm.xlu0 %252, %v151
    %v254 = vpop.permute.xlu0 %253
    %257 = vset.pattern.permute.xlu0 0
    %258 = vperm.xlu0 %257, %v152
    %v259 = vpop.permute.xlu0 %258
    %262 = vset.pattern.permute.xlu0 0
    %263 = vperm.xlu0 %262, %v153
    %v264 = vpop.permute.xlu0 %263
    %267 = vset.pattern.permute.xlu0 0
    %268 = vperm.xlu0 %267, %v154
    %v269 = vpop.permute.xlu0 %268
    %272 = vset.pattern.permute.xlu0 0
    %273 = vperm.xlu0 %272, %v155
    %v274 = vpop.permute.xlu0 %273
    %277 = vset.pattern.permute.xlu0 0
    %278 = vperm.xlu0 %277, %v156
    %v279 = vpop.permute.xlu0 %278
    %282 = vset.pattern.permute.xlu0 0
    %283 = vperm.xlu0 %282, %v157
    %v284 = vpop.permute.xlu0 %283
    %287 = vset.pattern.permute.xlu0 0
    %288 = vperm.xlu0 %287, %v158
    %v289 = vpop.permute.xlu0 %288
    %292 = vset.pattern.permute.xlu0 0
    %293 = vperm.xlu0 %292, %v159
    %v294 = vpop.permute.xlu0 %293
    %297 = vset.pattern.permute.xlu0 0
    %298 = vperm.xlu0 %297, %v160
    %v299 = vpop.permute.xlu0 %298
    %302 = vset.pattern.permute.xlu0 0
    %303 = vperm.xlu0 %302, %v161
    %v304 = vpop.permute.xlu0 %303
    %307 = vset.pattern.permute.xlu0 0
    %308 = vperm.xlu0 %307, %v162
    %v309 = vpop.permute.xlu0 %308
    %312 = vset.pattern.permute.xlu0 0
    %313 = vperm.xlu0 %312, %v163
    %v314 = vpop.permute.xlu0 %313
    %317 = vset.pattern.permute.xlu0 0
    %318 = vperm.xlu0 %317, %v164
    %v319 = vpop.permute.xlu0 %318
    %322 = vset.pattern.permute.xlu0 0
    %323 = vperm.xlu0 %322, %v165
    %v324 = vpop.permute.xlu0 %323
    %v358 = vunpack.c.l.b16 %v102
    %v359 = vunpack.c.l.b16 %v103
    %v360 = vunpack.c.l.b16 %v104
    %v361 = vunpack.c.l.b16 %v105
    %v362 = vunpack.c.l.b16 %v106
    %v363 = vunpack.c.l.b16 %v107
    %v364 = vunpack.c.l.b16 %v108
    %v365 = vunpack.c.l.b16 %v109
    %v366 = vunpack.c.l.b16 %v110
    %v367 = vunpack.c.l.b16 %v111
    %v368 = vunpack.c.l.b16 %v112
    %v369 = vunpack.c.l.b16 %v113
    %v370 = vunpack.c.l.b16 %v114
    %v371 = vunpack.c.l.b16 %v115
    %v372 = vunpack.c.l.b16 %v116
    %v373 = vunpack.c.l.b16 %v117
    %v374 = vunpack.c.l.b16 %v118
    %v375 = vunpack.c.l.b16 %v119
    %v376 = vunpack.c.l.b16 %v120
    %v377 = vunpack.c.l.b16 %v121
    %v378 = vunpack.c.l.b16 %v122
    %v379 = vunpack.c.l.b16 %v123
    %v380 = vunpack.c.l.b16 %v124
    %v381 = vunpack.c.l.b16 %v125
    %v382 = vunpack.c.l.b16 %v126
    %v383 = vunpack.c.l.b16 %v127
    %v384 = vunpack.c.l.b16 %v128
    %v385 = vunpack.c.l.b16 %v129
    %v386 = vunpack.c.l.b16 %v130
    %v387 = vunpack.c.l.b16 %v131
    %v388 = vunpack.c.l.b16 %v132
    %v389 = vunpack.c.l.b16 %v133
    %v390 = vpack.c.b16 %v359, %v358
    %v391 = vpack.c.b16 %v361, %v360
    %v392 = vpack.c.b16 %v363, %v362
    %v393 = vpack.c.b16 %v365, %v364
    %v394 = vpack.c.b16 %v367, %v366
    %v395 = vpack.c.b16 %v369, %v368
    %v396 = vpack.c.b16 %v371, %v370
    %v397 = vpack.c.b16 %v373, %v372
    %v398 = vpack.c.b16 %v375, %v374
    %v399 = vpack.c.b16 %v377, %v376
    %v400 = vpack.c.b16 %v379, %v378
    %v401 = vpack.c.b16 %v381, %v380
    %v402 = vpack.c.b16 %v383, %v382
    %v403 = vpack.c.b16 %v385, %v384
    %v404 = vpack.c.b16 %v387, %v386
    %v405 = vpack.c.b16 %v389, %v388
    %vm406 = vcmask 261120
    %v408 = vsel %vm406, %v390, 0
    %v411 = vsel %vm406, %v391, 0
    %v414 = vsel %vm406, %v392, 0
    %v417 = vsel %vm406, %v393, 0
    %v420 = vsel %vm406, %v394, 0
    %v423 = vsel %vm406, %v395, 0
    %v426 = vsel %vm406, %v396, 0
    %v429 = vsel %vm406, %v397, 0
    %v432 = vsel %vm406, %v398, 0
    %v435 = vsel %vm406, %v399, 0
    %v438 = vsel %vm406, %v400, 0
    %v441 = vsel %vm406, %v401, 0
    %v444 = vsel %vm406, %v402, 0
    %v447 = vsel %vm406, %v403, 0
    %v450 = vsel %vm406, %v404, 0
    %v453 = vsel %vm406, %v405, 0
    %455 = vmatprep.subr.bf16.mxu0 %v99
    %456 = vmatpush1.bf16.msra.mxu0 %v98
    %457 = vmatprep.subr.bf16.mxu0 %v101
    %458 = vmatpush1.bf16.msra.mxu0 %v100
    %459 = vmatprep.subr.bf16.mxu0 0
    %460 = vmatpush1.bf16.msra.mxu0 0
    %461 = vmatprep.subr.bf16.mxu0 0
    %462 = vmatpush1.bf16.msra.mxu0 0
    %463 = vmatprep.subr.bf16.mxu0 0
    %464 = vmatpush1.bf16.msra.mxu0 0
    %465 = vmatprep.subr.bf16.mxu0 0
    %466 = vmatpush1.bf16.msra.mxu0 0
    %467 = vmatprep.subr.bf16.mxu0 0
    %468 = vmatpush1.bf16.msra.mxu0 0
    %469 = vmatprep.subr.bf16.mxu0 0
    %470 = vmatpush1.bf16.msra.mxu0 0
    %471 = vmatprep.subr.bf16.mxu0 0
    %472 = vmatpush1.bf16.msra.mxu0 0
    %473 = vmatprep.subr.bf16.mxu0 0
    %474 = vmatpush1.bf16.msra.mxu0 0
    %475 = vmatprep.subr.bf16.mxu0 0
    %476 = vmatpush1.bf16.msra.mxu0 0
    %477 = vmatprep.subr.bf16.mxu0 0
    %478 = vmatpush1.bf16.msra.mxu0 0
    %479 = vmatprep.subr.bf16.mxu0 0
    %480 = vmatpush1.bf16.msra.mxu0 0
    %481 = vmatprep.subr.bf16.mxu0 0
    %482 = vmatpush1.bf16.msra.mxu0 0
    %483 = vmatprep.subr.bf16.mxu0 0
    %484 = vmatpush1.bf16.msra.mxu0 0
    %485 = vmatprep.subr.bf16.mxu0 0
    %486 = vmatpush1.bf16.msra.mxu0 0
    %487 = vmatprep.mubr.bf16.mxu0 0
    %488 = vmatmul.mubr.bf16.gmra.mrb[0].mxu0 %v408
    %v489 = vpop.f32.mrb[0].mxu0
    %v490 = vadd.f32 %v169, %v489
    %v491 = vpop.f32.mrb[0].mxu0
    %v492 = vadd.f32 %v169, %v491
    %v493 = vpop.f32.mrb[0].mxu0
    %v494 = vadd.f32 %v174, %v493
    %v495 = vpop.f32.mrb[0].mxu0
    %v496 = vadd.f32 %v174, %v495
    %497 = vmatprep.mubr.bf16.mxu0 0
    %498 = vmatmul.mubr.bf16.gmra.mrb[0].mxu0 %v411
    %v499 = vpop.f32.mrb[0].mxu0
    %v500 = vadd.f32 %v179, %v499
    %v501 = vpop.f32.mrb[0].mxu0
    %v502 = vadd.f32 %v179, %v501
    %v503 = vpop.f32.mrb[0].mxu0
    %v504 = vadd.f32 %v184, %v503
    %v505 = vpop.f32.mrb[0].mxu0
    %v506 = vadd.f32 %v184, %v505
    %507 = vmatprep.mubr.bf16.mxu0 0
    %508 = vmatmul.mubr.bf16.gmra.mrb[0].mxu0 %v414
    %v509 = vpop.f32.mrb[0].mxu0
    %v510 = vadd.f32 %v189, %v509
    %v511 = vpop.f32.mrb[0].mxu0
    %v512 = vadd.f32 %v189, %v511
    %v513 = vpop.f32.mrb[0].mxu0
    %v514 = vadd.f32 %v194, %v513
    %v515 = vpop.f32.mrb[0].mxu0
    %v516 = vadd.f32 %v194, %v515
    %517 = vmatprep.mubr.bf16.mxu0 0
    %518 = vmatmul.mubr.bf16.gmra.mrb[0].mxu0 %v417
    %v519 = vpop.f32.mrb[0].mxu0
    %v520 = vadd.f32 %v199, %v519
    %v521 = vpop.f32.mrb[0].mxu0
    %v522 = vadd.f32 %v199, %v521
    %v523 = vpop.f32.mrb[0].mxu0
    %v524 = vadd.f32 %v204, %v523
    %v525 = vpop.f32.mrb[0].mxu0
    %v526 = vadd.f32 %v204, %v525
    %527 = vmatprep.mubr.bf16.mxu0 0
    %528 = vmatmul.mubr.bf16.gmra.mrb[0].mxu0 %v420
    %v529 = vpop.f32.mrb[0].mxu0
    %v530 = vadd.f32 %v209, %v529
    %v531 = vpop.f32.mrb[0].mxu0
    %v532 = vadd.f32 %v209, %v531
    %v533 = vpop.f32.mrb[0].mxu0
    %v534 = vadd.f32 %v214, %v533
    %v535 = vpop.f32.mrb[0].mxu0
    %v536 = vadd.f32 %v214, %v535
    %537 = vmatprep.mubr.bf16.mxu0 0
    %538 = vmatmul.mubr.bf16.gmra.mrb[0].mxu0 %v423
    %v539 = vpop.f32.mrb[0].mxu0
    %v540 = vadd.f32 %v219, %v539
    %v541 = vpop.f32.mrb[0].mxu0
    %v542 = vadd.f32 %v219, %v541
    %v543 = vpop.f32.mrb[0].mxu0
    %v544 = vadd.f32 %v224, %v543
    %v545 = vpop.f32.mrb[0].mxu0
    %v546 = vadd.f32 %v224, %v545
    %547 = vmatprep.mubr.bf16.mxu0 0
    %548 = vmatmul.mubr.bf16.gmra.mrb[0].mxu0 %v426
    %v549 = vpop.f32.mrb[0].mxu0
    %v550 = vadd.f32 %v229, %v549
    %v551 = vpop.f32.mrb[0].mxu0
    %v552 = vadd.f32 %v229, %v551
    %v553 = vpop.f32.mrb[0].mxu0
    %v554 = vadd.f32 %v234, %v553
    %v555 = vpop.f32.mrb[0].mxu0
    %v556 = vadd.f32 %v234, %v555
    %557 = vmatprep.mubr.bf16.mxu0 0
    %558 = vmatmul.mubr.bf16.gmra.mrb[0].mxu0 %v429
    %v559 = vpop.f32.mrb[0].mxu0
    %v560 = vadd.f32 %v239, %v559
    %v561 = vpop.f32.mrb[0].mxu0
    %v562 = vadd.f32 %v239, %v561
    %v563 = vpop.f32.mrb[0].mxu0
    %v564 = vadd.f32 %v244, %v563
    %v565 = vpop.f32.mrb[0].mxu0
    %v566 = vadd.f32 %v244, %v565
    %567 = vmatprep.mubr.bf16.mxu0 0
    %568 = vmatmul.mubr.bf16.gmra.mrb[0].mxu0 %v432
    %v569 = vpop.f32.mrb[0].mxu0
    %v570 = vadd.f32 %v249, %v569
    %v571 = vpop.f32.mrb[0].mxu0
    %v572 = vadd.f32 %v249, %v571
    %v573 = vpop.f32.mrb[0].mxu0
    %v574 = vadd.f32 %v254, %v573
    %v575 = vpop.f32.mrb[0].mxu0
    %v576 = vadd.f32 %v254, %v575
    %577 = vmatprep.mubr.bf16.mxu0 0
    %578 = vmatmul.mubr.bf16.gmra.mrb[0].mxu0 %v435
    %v579 = vpop.f32.mrb[0].mxu0
    %v580 = vadd.f32 %v259, %v579
    %v581 = vpop.f32.mrb[0].mxu0
    %v582 = vadd.f32 %v259, %v581
    %v583 = vpop.f32.mrb[0].mxu0
    %v584 = vadd.f32 %v264, %v583
    %v585 = vpop.f32.mrb[0].mxu0
    %v586 = vadd.f32 %v264, %v585
    %587 = vmatprep.mubr.bf16.mxu0 0
    %588 = vmatmul.mubr.bf16.gmra.mrb[0].mxu0 %v438
    %v589 = vpop.f32.mrb[0].mxu0
    %v590 = vadd.f32 %v269, %v589
    %v591 = vpop.f32.mrb[0].mxu0
    %v592 = vadd.f32 %v269, %v591
    %v593 = vpop.f32.mrb[0].mxu0
    %v594 = vadd.f32 %v274, %v593
    %v595 = vpop.f32.mrb[0].mxu0
    %v596 = vadd.f32 %v274, %v595
    %597 = vmatprep.mubr.bf16.mxu0 0
    %598 = vmatmul.mubr.bf16.gmra.mrb[0].mxu0 %v441
    %v599 = vpop.f32.mrb[0].mxu0
    %v600 = vadd.f32 %v279, %v599
    %v601 = vpop.f32.mrb[0].mxu0
    %v602 = vadd.f32 %v279, %v601
    %v603 = vpop.f32.mrb[0].mxu0
    %v604 = vadd.f32 %v284, %v603
    %v605 = vpop.f32.mrb[0].mxu0
    %v606 = vadd.f32 %v284, %v605
    %607 = vmatprep.mubr.bf16.mxu0 0
    %608 = vmatmul.mubr.bf16.gmra.mrb[0].mxu0 %v444
    %v609 = vpop.f32.mrb[0].mxu0
    %v610 = vadd.f32 %v289, %v609
    %v611 = vpop.f32.mrb[0].mxu0
    %v612 = vadd.f32 %v289, %v611
    %v613 = vpop.f32.mrb[0].mxu0
    %v614 = vadd.f32 %v294, %v613
    %v615 = vpop.f32.mrb[0].mxu0
    %v616 = vadd.f32 %v294, %v615
    %617 = vmatprep.mubr.bf16.mxu0 0
    %618 = vmatmul.mubr.bf16.gmra.mrb[0].mxu0 %v447
    %v619 = vpop.f32.mrb[0].mxu0
    %v620 = vadd.f32 %v299, %v619
    %v621 = vpop.f32.mrb[0].mxu0
    %v622 = vadd.f32 %v299, %v621
    %v623 = vpop.f32.mrb[0].mxu0
    %v624 = vadd.f32 %v304, %v623
    %v625 = vpop.f32.mrb[0].mxu0
    %v626 = vadd.f32 %v304, %v625
    %627 = vmatprep.mubr.bf16.mxu0 0
    %628 = vmatmul.mubr.bf16.gmra.mrb[0].mxu0 %v450
    %v629 = vpop.f32.mrb[0].mxu0
    %v630 = vadd.f32 %v309, %v629
    %v631 = vpop.f32.mrb[0].mxu0
    %v632 = vadd.f32 %v309, %v631
    %v633 = vpop.f32.mrb[0].mxu0
    %v634 = vadd.f32 %v314, %v633
    %v635 = vpop.f32.mrb[0].mxu0
    %v636 = vadd.f32 %v314, %v635
    %637 = vmatprep.mubr.bf16.mxu0 0
    %638 = vmatmul.mubr.bf16.gmra.mrb[0].mxu0 %v453
    %v639 = vpop.f32.mrb[0].mxu0
    %v640 = vadd.f32 %v319, %v639
    %v641 = vpop.f32.mrb[0].mxu0
    %v642 = vadd.f32 %v319, %v641
    %v643 = vpop.f32.mrb[0].mxu0
    %v644 = vadd.f32 %v324, %v643
    %v645 = vpop.f32.mrb[0].mxu0
    %v646 = vadd.f32 %v324, %v645
    %647 = vdwg.mxu0
    %v648 = vmax.f32 %v490, 0.0
    %v649 = vmax.f32 %v492, 0.0
    %v650 = vmax.f32 %v494, 0.0
    %v651 = vmax.f32 %v496, 0.0
    %v652 = vmax.f32 %v500, 0.0
    %v653 = vmax.f32 %v502, 0.0
    %v654 = vmax.f32 %v504, 0.0
    %v655 = vmax.f32 %v506, 0.0
    %v656 = vmax.f32 %v510, 0.0
    %v657 = vmax.f32 %v512, 0.0
    %v658 = vmax.f32 %v514, 0.0
    %v659 = vmax.f32 %v516, 0.0
    %v660 = vmax.f32 %v520, 0.0
    %v661 = vmax.f32 %v522, 0.0
    %v662 = vmax.f32 %v524, 0.0
    %v663 = vmax.f32 %v526, 0.0
    %v664 = vmax.f32 %v530, 0.0
    %v665 = vmax.f32 %v532, 0.0
    %v666 = vmax.f32 %v534, 0.0
    %v667 = vmax.f32 %v536, 0.0
    %v668 = vmax.f32 %v540, 0.0
    %v669 = vmax.f32 %v542, 0.0
    %v670 = vmax.f32 %v544, 0.0
    %v671 = vmax.f32 %v546, 0.0
    %v672 = vmax.f32 %v550, 0.0
    %v673 = vmax.f32 %v552, 0.0
    %v674 = vmax.f32 %v554, 0.0
    %v675 = vmax.f32 %v556, 0.0
    %v676 = vmax.f32 %v560, 0.0
    %v677 = vmax.f32 %v562, 0.0
    %v678 = vmax.f32 %v564, 0.0
    %v679 = vmax.f32 %v566, 0.0
    %v680 = vmax.f32 %v570, 0.0
    %v681 = vmax.f32 %v572, 0.0
    %v682 = vmax.f32 %v574, 0.0
    %v683 = vmax.f32 %v576, 0.0
    %v684 = vmax.f32 %v580, 0.0
    %v685 = vmax.f32 %v582, 0.0
    %v686 = vmax.f32 %v584, 0.0
    %v687 = vmax.f32 %v586, 0.0
    %v688 = vmax.f32 %v590, 0.0
    %v689 = vmax.f32 %v592, 0.0
    %v690 = vmax.f32 %v594, 0.0
    %v691 = vmax.f32 %v596, 0.0
    %v692 = vmax.f32 %v600, 0.0
    %v693 = vmax.f32 %v602, 0.0
    %v694 = vmax.f32 %v604, 0.0
    %v695 = vmax.f32 %v606, 0.0
    %v696 = vmax.f32 %v610, 0.0
    %v697 = vmax.f32 %v612, 0.0
    %v698 = vmax.f32 %v614, 0.0
    %v699 = vmax.f32 %v616, 0.0
    %v700 = vmax.f32 %v620, 0.0
    %v701 = vmax.f32 %v622, 0.0
    %v702 = vmax.f32 %v624, 0.0
    %v703 = vmax.f32 %v626, 0.0
    %v704 = vmax.f32 %v630, 0.0
    %v705 = vmax.f32 %v632, 0.0
    %v706 = vmax.f32 %v634, 0.0
    %v707 = vmax.f32 %v636, 0.0
    %v708 = vmax.f32 %v640, 0.0
    %v709 = vmax.f32 %v642, 0.0
    %v710 = vmax.f32 %v644, 0.0
    %v711 = vmax.f32 %v646, 0.0
    %v712 = vpack.c.bf16 %v650, %v648
    %v713 = vpack.c.bf16 %v651, %v649
    %v714 = vpack.c.bf16 %v654, %v652
    %v715 = vpack.c.bf16 %v655, %v653
    %v716 = vpack.c.bf16 %v658, %v656
    %v717 = vpack.c.bf16 %v659, %v657
    %v718 = vpack.c.bf16 %v662, %v660
    %v719 = vpack.c.bf16 %v663, %v661
    %v720 = vpack.c.bf16 %v666, %v664
    %v721 = vpack.c.bf16 %v667, %v665
    %v722 = vpack.c.bf16 %v670, %v668
    %v723 = vpack.c.bf16 %v671, %v669
    %v724 = vpack.c.bf16 %v674, %v672
    %v725 = vpack.c.bf16 %v675, %v673
    %v726 = vpack.c.bf16 %v678, %v676
    %v727 = vpack.c.bf16 %v679, %v677
    %v728 = vpack.c.bf16 %v682, %v680
    %v729 = vpack.c.bf16 %v683, %v681
    %v730 = vpack.c.bf16 %v686, %v684
    %v731 = vpack.c.bf16 %v687, %v685
    %v732 = vpack.c.bf16 %v690, %v688
    %v733 = vpack.c.bf16 %v691, %v689
    %v734 = vpack.c.bf16 %v694, %v692
    %v735 = vpack.c.bf16 %v695, %v693
    %v736 = vpack.c.bf16 %v698, %v696
    %v737 = vpack.c.bf16 %v699, %v697
    %v738 = vpack.c.bf16 %v702, %v700
    %v739 = vpack.c.bf16 %v703, %v701
    %v740 = vpack.c.bf16 %v706, %v704
    %v741 = vpack.c.bf16 %v707, %v705
    %v742 = vpack.c.bf16 %v710, %v708
    %v743 = vpack.c.bf16 %v711, %v709
    %v744 = vld [vmem:[#allocation8] sm:$0xff]
    %v745 = vld [vmem:[#allocation8 + $0x8] sm:$0xff]
    %v746 = vld [vmem:[#allocation8 + $0x10] sm:$0xff]
    %v747 = vld [vmem:[#allocation8 + $0x18] sm:$0xff]
    %v748 = vld [vmem:[#allocation8 + $0x20] sm:$0xff]
    %v749 = vld [vmem:[#allocation8 + $0x28] sm:$0xff]
    %v750 = vld [vmem:[#allocation8 + $0x30] sm:$0xff]
    %v751 = vld [vmem:[#allocation8 + $0x38] sm:$0xff]
    %v752 = vld [vmem:[#allocation8 + $0x40] sm:$0xff]
    %v753 = vld [vmem:[#allocation8 + $0x48] sm:$0xff]
    %v754 = vld [vmem:[#allocation8 + $0x50] sm:$0xff]
    %v755 = vld [vmem:[#allocation8 + $0x58] sm:$0xff]
    %v756 = vld [vmem:[#allocation8 + $0x60] sm:$0xff]
    %v757 = vld [vmem:[#allocation8 + $0x68] sm:$0xff]
    %v758 = vld [vmem:[#allocation8 + $0x70] sm:$0xff]
    %v759 = vld [vmem:[#allocation8 + $0x78] sm:$0xff]
    %v760 = vld [vmem:[#allocation8 + $0x80] sm:$0xff]
    %v761 = vld [vmem:[#allocation8 + $0x88] sm:$0xff]
    %v762 = vld [vmem:[#allocation8 + $0x90] sm:$0xff]
    %v763 = vld [vmem:[#allocation8 + $0x98] sm:$0xff]
    %v764 = vld [vmem:[#allocation8 + $0xa0] sm:$0xff]
    %v765 = vld [vmem:[#allocation8 + $0xa8] sm:$0xff]
    %v766 = vld [vmem:[#allocation8 + $0xb0] sm:$0xff]
    %v767 = vld [vmem:[#allocation8 + $0xb8] sm:$0xff]
    %v768 = vld [vmem:[#allocation8 + $0xc0] sm:$0xff]
    %v769 = vld [vmem:[#allocation8 + $0xc8] sm:$0xff]
    %v770 = vld [vmem:[#allocation8 + $0xd0] sm:$0xff]
    %v771 = vld [vmem:[#allocation8 + $0xd8] sm:$0xff]
    %v772 = vld [vmem:[#allocation8 + $0xe0] sm:$0xff]
    %v773 = vld [vmem:[#allocation8 + $0xe8] sm:$0xff]
    %v774 = vld [vmem:[#allocation8 + $0xf0] sm:$0xff]
    %v775 = vld [vmem:[#allocation8 + $0xf8] sm:$0xff]
    %v776 = vld [vmem:[#allocation10] sm:$0xff]
    %v777 = vld [vmem:[#allocation10 + $0x8] sm:$0xff]
    %v778 = vld [vmem:[#allocation10 + $0x10] sm:$0xff]
    %v779 = vld [vmem:[#allocation10 + $0x18] sm:$0xff]
    %v780 = vld [vmem:[#allocation10 + $0x20] sm:$0xff]
    %v781 = vld [vmem:[#allocation10 + $0x28] sm:$0xff]
    %v782 = vld [vmem:[#allocation10 + $0x30] sm:$0xff]
    %v783 = vld [vmem:[#allocation10 + $0x38] sm:$0xff]
    %v784 = vld [vmem:[#allocation10 + $0x40] sm:$0xff]
    %v785 = vld [vmem:[#allocation10 + $0x48] sm:$0xff]
    %v786 = vld [vmem:[#allocation10 + $0x50] sm:$0xff]
    %v787 = vld [vmem:[#allocation10 + $0x58] sm:$0xff]
    %v788 = vld [vmem:[#allocation10 + $0x60] sm:$0xff]
    %v789 = vld [vmem:[#allocation10 + $0x68] sm:$0xff]
    %v790 = vld [vmem:[#allocation10 + $0x70] sm:$0xff]
    %v791 = vld [vmem:[#allocation10 + $0x78] sm:$0xff]
    %v792 = vld [vmem:[#allocation10 + $0x80] sm:$0xff]
    %v793 = vld [vmem:[#allocation10 + $0x88] sm:$0xff]
    %v794 = vld [vmem:[#allocation10 + $0x90] sm:$0xff]
    %v795 = vld [vmem:[#allocation10 + $0x98] sm:$0xff]
    %v796 = vld [vmem:[#allocation10 + $0xa0] sm:$0xff]
    %v797 = vld [vmem:[#allocation10 + $0xa8] sm:$0xff]
    %v798 = vld [vmem:[#allocation10 + $0xb0] sm:$0xff]
    %v799 = vld [vmem:[#allocation10 + $0xb8] sm:$0xff]
    %v800 = vld [vmem:[#allocation10 + $0xc0] sm:$0xff]
    %v801 = vld [vmem:[#allocation10 + $0xc8] sm:$0xff]
    %v802 = vld [vmem:[#allocation10 + $0xd0] sm:$0xff]
    %v803 = vld [vmem:[#allocation10 + $0xd8] sm:$0xff]
    %v804 = vld [vmem:[#allocation10 + $0xe0] sm:$0xff]
    %v805 = vld [vmem:[#allocation10 + $0xe8] sm:$0xff]
    %v806 = vld [vmem:[#allocation10 + $0xf0] sm:$0xff]
    %v807 = vld [vmem:[#allocation10 + $0xf8] sm:$0xff]
    %809 = vset.pattern.permute.xlu0 0
    %810 = vperm.xlu0 %809, %v776
    %v811 = vpop.permute.xlu0 %810
    %814 = vset.pattern.permute.xlu0 0
    %815 = vperm.xlu0 %814, %v777
    %v816 = vpop.permute.xlu0 %815
    %819 = vset.pattern.permute.xlu0 0
    %820 = vperm.xlu0 %819, %v778
    %v821 = vpop.permute.xlu0 %820
    %824 = vset.pattern.permute.xlu0 0
    %825 = vperm.xlu0 %824, %v779
    %v826 = vpop.permute.xlu0 %825
    %829 = vset.pattern.permute.xlu0 0
    %830 = vperm.xlu0 %829, %v780
    %v831 = vpop.permute.xlu0 %830
    %834 = vset.pattern.permute.xlu0 0
    %835 = vperm.xlu0 %834, %v781
    %v836 = vpop.permute.xlu0 %835
    %839 = vset.pattern.permute.xlu0 0
    %840 = vperm.xlu0 %839, %v782
    %v841 = vpop.permute.xlu0 %840
    %844 = vset.pattern.permute.xlu0 0
    %845 = vperm.xlu0 %844, %v783
    %v846 = vpop.permute.xlu0 %845
    %849 = vset.pattern.permute.xlu0 0
    %850 = vperm.xlu0 %849, %v784
    %v851 = vpop.permute.xlu0 %850
    %854 = vset.pattern.permute.xlu0 0
    %855 = vperm.xlu0 %854, %v785
    %v856 = vpop.permute.xlu0 %855
    %859 = vset.pattern.permute.xlu0 0
    %860 = vperm.xlu0 %859, %v786
    %v861 = vpop.permute.xlu0 %860
    %864 = vset.pattern.permute.xlu0 0
    %865 = vperm.xlu0 %864, %v787
    %v866 = vpop.permute.xlu0 %865
    %869 = vset.pattern.permute.xlu0 0
    %870 = vperm.xlu0 %869, %v788
    %v871 = vpop.permute.xlu0 %870
    %874 = vset.pattern.permute.xlu0 0
    %875 = vperm.xlu0 %874, %v789
    %v876 = vpop.permute.xlu0 %875
    %879 = vset.pattern.permute.xlu0 0
    %880 = vperm.xlu0 %879, %v790
    %v881 = vpop.permute.xlu0 %880
    %884 = vset.pattern.permute.xlu0 0
    %885 = vperm.xlu0 %884, %v791
    %v886 = vpop.permute.xlu0 %885
    %889 = vset.pattern.permute.xlu0 0
    %890 = vperm.xlu0 %889, %v792
    %v891 = vpop.permute.xlu0 %890
    %894 = vset.pattern.permute.xlu0 0
    %895 = vperm.xlu0 %894, %v793
    %v896 = vpop.permute.xlu0 %895
    %899 = vset.pattern.permute.xlu0 0
    %900 = vperm.xlu0 %899, %v794
    %v901 = vpop.permute.xlu0 %900
    %904 = vset.pattern.permute.xlu0 0
    %905 = vperm.xlu0 %904, %v795
    %v906 = vpop.permute.xlu0 %905
    %909 = vset.pattern.permute.xlu0 0
    %910 = vperm.xlu0 %909, %v796
    %v911 = vpop.permute.xlu0 %910
    %914 = vset.pattern.permute.xlu0 0
    %915 = vperm.xlu0 %914, %v797
    %v916 = vpop.permute.xlu0 %915
    %919 = vset.pattern.permute.xlu0 0
    %920 = vperm.xlu0 %919, %v798
    %v921 = vpop.permute.xlu0 %920
    %924 = vset.pattern.permute.xlu0 0
    %925 = vperm.xlu0 %924, %v799
    %v926 = vpop.permute.xlu0 %925
    %929 = vset.pattern.permute.xlu0 0
    %930 = vperm.xlu0 %929, %v800
    %v931 = vpop.permute.xlu0 %930
    %934 = vset.pattern.permute.xlu0 0
    %935 = vperm.xlu0 %934, %v801
    %v936 = vpop.permute.xlu0 %935
    %939 = vset.pattern.permute.xlu0 0
    %940 = vperm.xlu0 %939, %v802
    %v941 = vpop.permute.xlu0 %940
    %944 = vset.pattern.permute.xlu0 0
    %945 = vperm.xlu0 %944, %v803
    %v946 = vpop.permute.xlu0 %945
    %949 = vset.pattern.permute.xlu0 0
    %950 = vperm.xlu0 %949, %v804
    %v951 = vpop.permute.xlu0 %950
    %954 = vset.pattern.permute.xlu0 0
    %955 = vperm.xlu0 %954, %v805
    %v956 = vpop.permute.xlu0 %955
    %959 = vset.pattern.permute.xlu0 0
    %960 = vperm.xlu0 %959, %v806
    %v961 = vpop.permute.xlu0 %960
    %964 = vset.pattern.permute.xlu0 0
    %965 = vperm.xlu0 %964, %v807
    %v966 = vpop.permute.xlu0 %965
    %v1000 = vunpack.c.l.b16 %v744
    %v1001 = vunpack.c.h.b16 %v744
    %v1002 = vunpack.c.l.b16 %v745
    %v1003 = vunpack.c.h.b16 %v745
    %v1004 = vunpack.c.l.b16 %v746
    %v1005 = vunpack.c.h.b16 %v746
    %v1006 = vunpack.c.l.b16 %v747
    %v1007 = vunpack.c.h.b16 %v747
    %v1008 = vunpack.c.l.b16 %v748
    %v1009 = vunpack.c.h.b16 %v748
    %v1010 = vunpack.c.l.b16 %v749
    %v1011 = vunpack.c.h.b16 %v749
    %v1012 = vunpack.c.l.b16 %v750
    %v1013 = vunpack.c.h.b16 %v750
    %v1014 = vunpack.c.l.b16 %v751
    %v1015 = vunpack.c.h.b16 %v751
    %v1016 = vunpack.c.l.b16 %v752
    %v1017 = vunpack.c.h.b16 %v752
    %v1018 = vunpack.c.l.b16 %v753
    %v1019 = vunpack.c.h.b16 %v753
    %v1020 = vunpack.c.l.b16 %v754
    %v1021 = vunpack.c.h.b16 %v754
    %v1022 = vunpack.c.l.b16 %v755
    %v1023 = vunpack.c.h.b16 %v755
    %v1024 = vunpack.c.l.b16 %v756
    %v1025 = vunpack.c.h.b16 %v756
    %v1026 = vunpack.c.l.b16 %v757
    %v1027 = vunpack.c.h.b16 %v757
    %v1028 = vunpack.c.l.b16 %v758
    %v1029 = vunpack.c.h.b16 %v758
    %v1030 = vunpack.c.l.b16 %v759
    %v1031 = vunpack.c.h.b16 %v759
    %v1032 = vunpack.c.l.b16 %v760
    %v1033 = vunpack.c.h.b16 %v760
    %v1034 = vunpack.c.l.b16 %v761
    %v1035 = vunpack.c.h.b16 %v761
    %v1036 = vunpack.c.l.b16 %v762
    %v1037 = vunpack.c.h.b16 %v762
    %v1038 = vunpack.c.l.b16 %v763
    %v1039 = vunpack.c.h.b16 %v763
    %v1040 = vunpack.c.l.b16 %v764
    %v1041 = vunpack.c.h.b16 %v764
    %v1042 = vunpack.c.l.b16 %v765
    %v1043 = vunpack.c.h.b16 %v765
    %v1044 = vunpack.c.l.b16 %v766
    %v1045 = vunpack.c.h.b16 %v766
    %v1046 = vunpack.c.l.b16 %v767
    %v1047 = vunpack.c.h.b16 %v767
    %v1048 = vunpack.c.l.b16 %v768
    %v1049 = vunpack.c.h.b16 %v768
    %v1050 = vunpack.c.l.b16 %v769
    %v1051 = vunpack.c.h.b16 %v769
    %v1052 = vunpack.c.l.b16 %v770
    %v1053 = vunpack.c.h.b16 %v770
    %v1054 = vunpack.c.l.b16 %v771
    %v1055 = vunpack.c.h.b16 %v771
    %v1056 = vunpack.c.l.b16 %v772
    %v1057 = vunpack.c.h.b16 %v772
    %v1058 = vunpack.c.l.b16 %v773
    %v1059 = vunpack.c.h.b16 %v773
    %v1060 = vunpack.c.l.b16 %v774
    %v1061 = vunpack.c.h.b16 %v774
    %v1062 = vunpack.c.l.b16 %v775
    %v1063 = vunpack.c.h.b16 %v775
    %v1064 = vpack.c.b16 %v1002, %v1000
    %v1065 = vpack.c.b16 %v1003, %v1001
    %v1066 = vpack.c.b16 %v1006, %v1004
    %v1067 = vpack.c.b16 %v1007, %v1005
    %v1068 = vpack.c.b16 %v1010, %v1008
    %v1069 = vpack.c.b16 %v1011, %v1009
    %v1070 = vpack.c.b16 %v1014, %v1012
    %v1071 = vpack.c.b16 %v1015, %v1013
    %v1072 = vpack.c.b16 %v1018, %v1016
    %v1073 = vpack.c.b16 %v1019, %v1017
    %v1074 = vpack.c.b16 %v1022, %v1020
    %v1075 = vpack.c.b16 %v1023, %v1021
    %v1076 = vpack.c.b16 %v1026, %v1024
    %v1077 = vpack.c.b16 %v1027, %v1025
    %v1078 = vpack.c.b16 %v1030, %v1028
    %v1079 = vpack.c.b16 %v1031, %v1029
    %v1080 = vpack.c.b16 %v1034, %v1032
    %v1081 = vpack.c.b16 %v1035, %v1033
    %v1082 = vpack.c.b16 %v1038, %v1036
    %v1083 = vpack.c.b16 %v1039, %v1037
    %v1084 = vpack.c.b16 %v1042, %v1040
    %v1085 = vpack.c.b16 %v1043, %v1041
    %v1086 = vpack.c.b16 %v1046, %v1044
    %v1087 = vpack.c.b16 %v1047, %v1045
    %v1088 = vpack.c.b16 %v1050, %v1048
    %v1089 = vpack.c.b16 %v1051, %v1049
    %v1090 = vpack.c.b16 %v1054, %v1052
    %v1091 = vpack.c.b16 %v1055, %v1053
    %v1092 = vpack.c.b16 %v1058, %v1056
    %v1093 = vpack.c.b16 %v1059, %v1057
    %v1094 = vpack.c.b16 %v1062, %v1060
    %v1095 = vpack.c.b16 %v1063, %v1061
    %1128 = vmatprep.subr.bf16.mxu0 %v713
    %1129 = vmatpush1.bf16.msra.mxu0 %v712
    %1130 = vmatprep.subr.bf16.mxu0 %v715
    %1131 = vmatpush1.bf16.msra.mxu0 %v714
    %1132 = vmatprep.subr.bf16.mxu0 %v717
    %1133 = vmatpush1.bf16.msra.mxu0 %v716
    %1134 = vmatprep.subr.bf16.mxu0 %v719
    %1135 = vmatpush1.bf16.msra.mxu0 %v718
    %1136 = vmatprep.subr.bf16.mxu0 %v721
    %1137 = vmatpush1.bf16.msra.mxu0 %v720
    %1138 = vmatprep.subr.bf16.mxu0 %v723
    %1139 = vmatpush1.bf16.msra.mxu0 %v722
    %1140 = vmatprep.subr.bf16.mxu0 %v725
    %1141 = vmatpush1.bf16.msra.mxu0 %v724
    %1142 = vmatprep.subr.bf16.mxu0 %v727
    %1143 = vmatpush1.bf16.msra.mxu0 %v726
    %1144 = vmatprep.subr.bf16.mxu0 %v729
    %1145 = vmatpush1.bf16.msra.mxu0 %v728
    %1146 = vmatprep.subr.bf16.mxu0 %v731
    %1147 = vmatpush1.bf16.msra.mxu0 %v730
    %1148 = vmatprep.subr.bf16.mxu0 %v733
    %1149 = vmatpush1.bf16.msra.mxu0 %v732
    %1150 = vmatprep.subr.bf16.mxu0 %v735
    %1151 = vmatpush1.bf16.msra.mxu0 %v734
    %1152 = vmatprep.subr.bf16.mxu0 %v737
    %1153 = vmatpush1.bf16.msra.mxu0 %v736
    %1154 = vmatprep.subr.bf16.mxu0 %v739
    %1155 = vmatpush1.bf16.msra.mxu0 %v738
    %1156 = vmatprep.subr.bf16.mxu0 %v741
    %1157 = vmatpush1.bf16.msra.mxu0 %v740
    %1158 = vmatprep.subr.bf16.mxu0 %v743
    %1159 = vmatpush1.bf16.msra.mxu0 %v742
    %1160 = vmatprep.mubr.bf16.mxu0 %v1065
    %1161 = vmatmul.mubr.bf16.gmra.mrb[0].mxu0 %v1064
    %v1162 = vpop.f32.mrb[0].mxu0
    %v1163 = vadd.f32 %v811, %v1162
    %v1164 = vpop.f32.mrb[0].mxu0
    %v1165 = vadd.f32 %v811, %v1164
    %v1166 = vpop.f32.mrb[0].mxu0
    %v1167 = vadd.f32 %v816, %v1166
    %v1168 = vpop.f32.mrb[0].mxu0
    %v1169 = vadd.f32 %v816, %v1168
    %1170 = vmatprep.mubr.bf16.mxu0 %v1067
    %1171 = vmatmul.mubr.bf16.gmra.mrb[0].mxu0 %v1066
    %v1172 = vpop.f32.mrb[0].mxu0
    %v1173 = vadd.f32 %v821, %v1172
    %v1174 = vpop.f32.mrb[0].mxu0
    %v1175 = vadd.f32 %v821, %v1174
    %v1176 = vpop.f32.mrb[0].mxu0
    %v1177 = vadd.f32 %v826, %v1176
    %v1178 = vpop.f32.mrb[0].mxu0
    %v1179 = vadd.f32 %v826, %v1178
    %1180 = vmatprep.mubr.bf16.mxu0 %v1069
    %1181 = vmatmul.mubr.bf16.gmra.mrb[0].mxu0 %v1068
    %v1182 = vpop.f32.mrb[0].mxu0
    %v1183 = vadd.f32 %v831, %v1182
    %v1184 = vpop.f32.mrb[0].mxu0
    %v1185 = vadd.f32 %v831, %v1184
    %v1186 = vpop.f32.mrb[0].mxu0
    %v1187 = vadd.f32 %v836, %v1186
    %v1188 = vpop.f32.mrb[0].mxu0
    %v1189 = vadd.f32 %v836, %v1188
    %1190 = vmatprep.mubr.bf16.mxu0 %v1071
    %1191 = vmatmul.mubr.bf16.gmra.mrb[0].mxu0 %v1070
    %v1192 = vpop.f32.mrb[0].mxu0
    %v1193 = vadd.f32 %v841, %v1192
    %v1194 = vpop.f32.mrb[0].mxu0
    %v1195 = vadd.f32 %v841, %v1194
    %v1196 = vpop.f32.mrb[0].mxu0
    %v1197 = vadd.f32 %v846, %v1196
    %v1198 = vpop.f32.mrb[0].mxu0
    %v1199 = vadd.f32 %v846, %v1198
    %1200 = vmatprep.mubr.bf16.mxu0 %v1073
    %1201 = vmatmul.mubr.bf16.gmra.mrb[0].mxu0 %v1072
    %v1202 = vpop.f32.mrb[0].mxu0
    %v1203 = vadd.f32 %v851, %v1202
    %v1204 = vpop.f32.mrb[0].mxu0
    %v1205 = vadd.f32 %v851, %v1204
    %v1206 = vpop.f32.mrb[0].mxu0
    %v1207 = vadd.f32 %v856, %v1206
    %v1208 = vpop.f32.mrb[0].mxu0
    %v1209 = vadd.f32 %v856, %v1208
    %1210 = vmatprep.mubr.bf16.mxu0 %v1075
    %1211 = vmatmul.mubr.bf16.gmra.mrb[0].mxu0 %v1074
    %v1212 = vpop.f32.mrb[0].mxu0
    %v1213 = vadd.f32 %v861, %v1212
    %v1214 = vpop.f32.mrb[0].mxu0
    %v1215 = vadd.f32 %v861, %v1214
    %v1216 = vpop.f32.mrb[0].mxu0
    %v1217 = vadd.f32 %v866, %v1216
    %v1218 = vpop.f32.mrb[0].mxu0
    %v1219 = vadd.f32 %v866, %v1218
    %1220 = vmatprep.mubr.bf16.mxu0 %v1077
    %1221 = vmatmul.mubr.bf16.gmra.mrb[0].mxu0 %v1076
    %v1222 = vpop.f32.mrb[0].mxu0
    %v1223 = vadd.f32 %v871, %v1222
    %v1224 = vpop.f32.mrb[0].mxu0
    %v1225 = vadd.f32 %v871, %v1224
    %v1226 = vpop.f32.mrb[0].mxu0
    %v1227 = vadd.f32 %v876, %v1226
    %v1228 = vpop.f32.mrb[0].mxu0
    %v1229 = vadd.f32 %v876, %v1228
    %1230 = vmatprep.mubr.bf16.mxu0 %v1079
    %1231 = vmatmul.mubr.bf16.gmra.mrb[0].mxu0 %v1078
    %v1232 = vpop.f32.mrb[0].mxu0
    %v1233 = vadd.f32 %v881, %v1232
    %v1234 = vpop.f32.mrb[0].mxu0
    %v1235 = vadd.f32 %v881, %v1234
    %v1236 = vpop.f32.mrb[0].mxu0
    %v1237 = vadd.f32 %v886, %v1236
    %v1238 = vpop.f32.mrb[0].mxu0
    %v1239 = vadd.f32 %v886, %v1238
    %1240 = vmatprep.mubr.bf16.mxu0 %v1081
    %1241 = vmatmul.mubr.bf16.gmra.mrb[0].mxu0 %v1080
    %v1242 = vpop.f32.mrb[0].mxu0
    %v1243 = vadd.f32 %v891, %v1242
    %v1244 = vpop.f32.mrb[0].mxu0
    %v1245 = vadd.f32 %v891, %v1244
    %v1246 = vpop.f32.mrb[0].mxu0
    %v1247 = vadd.f32 %v896, %v1246
    %v1248 = vpop.f32.mrb[0].mxu0
    %v1249 = vadd.f32 %v896, %v1248
    %1250 = vmatprep.mubr.bf16.mxu0 %v1083
    %1251 = vmatmul.mubr.bf16.gmra.mrb[0].mxu0 %v1082
    %v1252 = vpop.f32.mrb[0].mxu0
    %v1253 = vadd.f32 %v901, %v1252
    %v1254 = vpop.f32.mrb[0].mxu0
    %v1255 = vadd.f32 %v901, %v1254
    %v1256 = vpop.f32.mrb[0].mxu0
    %v1257 = vadd.f32 %v906, %v1256
    %v1258 = vpop.f32.mrb[0].mxu0
    %v1259 = vadd.f32 %v906, %v1258
    %1260 = vmatprep.mubr.bf16.mxu0 %v1085
    %1261 = vmatmul.mubr.bf16.gmra.mrb[0].mxu0 %v1084
    %v1262 = vpop.f32.mrb[0].mxu0
    %v1263 = vadd.f32 %v911, %v1262
    %v1264 = vpop.f32.mrb[0].mxu0
    %v1265 = vadd.f32 %v911, %v1264
    %v1266 = vpop.f32.mrb[0].mxu0
    %v1267 = vadd.f32 %v916, %v1266
    %v1268 = vpop.f32.mrb[0].mxu0
    %v1269 = vadd.f32 %v916, %v1268
    %1270 = vmatprep.mubr.bf16.mxu0 %v1087
    %1271 = vmatmul.mubr.bf16.gmra.mrb[0].mxu0 %v1086
    %v1272 = vpop.f32.mrb[0].mxu0
    %v1273 = vadd.f32 %v921, %v1272
    %v1274 = vpop.f32.mrb[0].mxu0
    %v1275 = vadd.f32 %v921, %v1274
    %v1276 = vpop.f32.mrb[0].mxu0
    %v1277 = vadd.f32 %v926, %v1276
    %v1278 = vpop.f32.mrb[0].mxu0
    %v1279 = vadd.f32 %v926, %v1278
    %1280 = vmatprep.mubr.bf16.mxu0 %v1089
    %1281 = vmatmul.mubr.bf16.gmra.mrb[0].mxu0 %v1088
    %v1282 = vpop.f32.mrb[0].mxu0
    %v1283 = vadd.f32 %v931, %v1282
    %v1284 = vpop.f32.mrb[0].mxu0
    %v1285 = vadd.f32 %v931, %v1284
    %v1286 = vpop.f32.mrb[0].mxu0
    %v1287 = vadd.f32 %v936, %v1286
    %v1288 = vpop.f32.mrb[0].mxu0
    %v1289 = vadd.f32 %v936, %v1288
    %1290 = vmatprep.mubr.bf16.mxu0 %v1091
    %1291 = vmatmul.mubr.bf16.gmra.mrb[0].mxu0 %v1090
    %v1292 = vpop.f32.mrb[0].mxu0
    %v1293 = vadd.f32 %v941, %v1292
    %v1294 = vpop.f32.mrb[0].mxu0
    %v1295 = vadd.f32 %v941, %v1294
    %v1296 = vpop.f32.mrb[0].mxu0
    %v1297 = vadd.f32 %v946, %v1296
    %v1298 = vpop.f32.mrb[0].mxu0
    %v1299 = vadd.f32 %v946, %v1298
    %1300 = vmatprep.mubr.bf16.mxu0 %v1093
    %1301 = vmatmul.mubr.bf16.gmra.mrb[0].mxu0 %v1092
    %v1302 = vpop.f32.mrb[0].mxu0
    %v1303 = vadd.f32 %v951, %v1302
    %v1304 = vpop.f32.mrb[0].mxu0
    %v1305 = vadd.f32 %v951, %v1304
    %v1306 = vpop.f32.mrb[0].mxu0
    %v1307 = vadd.f32 %v956, %v1306
    %v1308 = vpop.f32.mrb[0].mxu0
    %v1309 = vadd.f32 %v956, %v1308
    %1310 = vmatprep.mubr.bf16.mxu0 %v1095
    %1311 = vmatmul.mubr.bf16.gmra.mrb[0].mxu0 %v1094
    %v1312 = vpop.f32.mrb[0].mxu0
    %v1313 = vadd.f32 %v961, %v1312
    %v1314 = vpop.f32.mrb[0].mxu0
    %v1315 = vadd.f32 %v961, %v1314
    %v1316 = vpop.f32.mrb[0].mxu0
    %v1317 = vadd.f32 %v966, %v1316
    %v1318 = vpop.f32.mrb[0].mxu0
    %v1319 = vadd.f32 %v966, %v1318
    %1320 = vdwg.mxu0
    %1321 = vst [vmem:[#allocation11] sm:$0xff] %v1163
    %1322 = vst [vmem:[#allocation11 + $0x8] sm:$0xff] %v1165
    %1323 = vst [vmem:[#allocation11 + $0x10] sm:$0xff] %v1167
    %1324 = vst [vmem:[#allocation11 + $0x18] sm:$0xff] %v1169
    %1325 = vst [vmem:[#allocation11 + $0x20] sm:$0xff] %v1173
    %1326 = vst [vmem:[#allocation11 + $0x28] sm:$0xff] %v1175
    %1327 = vst [vmem:[#allocation11 + $0x30] sm:$0xff] %v1177
    %1328 = vst [vmem:[#allocation11 + $0x38] sm:$0xff] %v1179
    %1329 = vst [vmem:[#allocation11 + $0x40] sm:$0xff] %v1183
    %1330 = vst [vmem:[#allocation11 + $0x48] sm:$0xff] %v1185
    %1331 = vst [vmem:[#allocation11 + $0x50] sm:$0xff] %v1187
    %1332 = vst [vmem:[#allocation11 + $0x58] sm:$0xff] %v1189
    %1333 = vst [vmem:[#allocation11 + $0x60] sm:$0xff] %v1193
    %1334 = vst [vmem:[#allocation11 + $0x68] sm:$0xff] %v1195
    %1335 = vst [vmem:[#allocation11 + $0x70] sm:$0xff] %v1197
    %1336 = vst [vmem:[#allocation11 + $0x78] sm:$0xff] %v1199
    %1337 = vst [vmem:[#allocation11 + $0x80] sm:$0xff] %v1203
    %1338 = vst [vmem:[#allocation11 + $0x88] sm:$0xff] %v1205
    %1339 = vst [vmem:[#allocation11 + $0x90] sm:$0xff] %v1207
    %1340 = vst [vmem:[#allocation11 + $0x98] sm:$0xff] %v1209
    %1341 = vst [vmem:[#allocation11 + $0xa0] sm:$0xff] %v1213
    %1342 = vst [vmem:[#allocation11 + $0xa8] sm:$0xff] %v1215
    %1343 = vst [vmem:[#allocation11 + $0xb0] sm:$0xff] %v1217
    %1344 = vst [vmem:[#allocation11 + $0xb8] sm:$0xff] %v1219
    %1345 = vst [vmem:[#allocation11 + $0xc0] sm:$0xff] %v1223
    %1346 = vst [vmem:[#allocation11 + $0xc8] sm:$0xff] %v1225
    %1347 = vst [vmem:[#allocation11 + $0xd0] sm:$0xff] %v1227
    %1348 = vst [vmem:[#allocation11 + $0xd8] sm:$0xff] %v1229
    %1349 = vst [vmem:[#allocation11 + $0xe0] sm:$0xff] %v1233
    %1350 = vst [vmem:[#allocation11 + $0xe8] sm:$0xff] %v1235
    %1351 = vst [vmem:[#allocation11 + $0xf0] sm:$0xff] %v1237
    %1352 = vst [vmem:[#allocation11 + $0xf8] sm:$0xff] %v1239
    %1353 = vst [vmem:[#allocation11 + $0x100] sm:$0xff] %v1243
    %1354 = vst [vmem:[#allocation11 + $0x108] sm:$0xff] %v1245
    %1355 = vst [vmem:[#allocation11 + $0x110] sm:$0xff] %v1247
    %1356 = vst [vmem:[#allocation11 + $0x118] sm:$0xff] %v1249
    %1357 = vst [vmem:[#allocation11 + $0x120] sm:$0xff] %v1253
    %1358 = vst [vmem:[#allocation11 + $0x128] sm:$0xff] %v1255
    %1359 = vst [vmem:[#allocation11 + $0x130] sm:$0xff] %v1257
    %1360 = vst [vmem:[#allocation11 + $0x138] sm:$0xff] %v1259
    %1361 = vst [vmem:[#allocation11 + $0x140] sm:$0xff] %v1263
    %1362 = vst [vmem:[#allocation11 + $0x148] sm:$0xff] %v1265
    %1363 = vst [vmem:[#allocation11 + $0x150] sm:$0xff] %v1267
    %1364 = vst [vmem:[#allocation11 + $0x158] sm:$0xff] %v1269
    %1365 = vst [vmem:[#allocation11 + $0x160] sm:$0xff] %v1273
    %1366 = vst [vmem:[#allocation11 + $0x168] sm:$0xff] %v1275
    %1367 = vst [vmem:[#allocation11 + $0x170] sm:$0xff] %v1277
    %1368 = vst [vmem:[#allocation11 + $0x178] sm:$0xff] %v1279
    %1369 = vst [vmem:[#allocation11 + $0x180] sm:$0xff] %v1283
    %1370 = vst [vmem:[#allocation11 + $0x188] sm:$0xff] %v1285
    %1371 = vst [vmem:[#allocation11 + $0x190] sm:$0xff] %v1287
    %1372 = vst [vmem:[#allocation11 + $0x198] sm:$0xff] %v1289
    %1373 = vst [vmem:[#allocation11 + $0x1a0] sm:$0xff] %v1293
    %1374 = vst [vmem:[#allocation11 + $0x1a8] sm:$0xff] %v1295
    %1375 = vst [vmem:[#allocation11 + $0x1b0] sm:$0xff] %v1297
    %1376 = vst [vmem:[#allocation11 + $0x1b8] sm:$0xff] %v1299
    %1377 = vst [vmem:[#allocation11 + $0x1c0] sm:$0xff] %v1303
    %1378 = vst [vmem:[#allocation11 + $0x1c8] sm:$0xff] %v1305
    %1379 = vst [vmem:[#allocation11 + $0x1d0] sm:$0xff] %v1307
    %1380 = vst [vmem:[#allocation11 + $0x1d8] sm:$0xff] %v1309
    %1381 = vst [vmem:[#allocation11 + $0x1e0] sm:$0xff] %v1313
    %1382 = vst [vmem:[#allocation11 + $0x1e8] sm:$0xff] %v1315
    %1383 = vst [vmem:[#allocation11 + $0x1f0] sm:$0xff] %v1317
    %1384 = vst [vmem:[#allocation11 + $0x1f8] sm:$0xff] %v1319
    // Predicated region
    $region42: #{conv_transpose2_1d.1} parent=1 // pred_check
      _
    $region43: #{conv_transpose2_1d.1} parent=1 // pred_check_branch
      %1386 = sbr.rel (0) target = $region45
    $region44: #{conv_transpose2_1d.1} parent=1 // pred_region
      %s1388 = ssub.s32 8192, 8192
      %1389 = vsyncadd [#allocation4], %s1388
      %s1390 = sshll.u32 [#allocation11], 4
      %s1391 = int_to_ptr.vmem [resolvable:$true] %s1390
      %1396 = dma.vmem_to_hbm [thread:$0]  %s1391, 8192, %s5, [#allocation4], 256, 256, 16
    $region45: #{conv_transpose2_1d.1} parent=1 // pred_fallthru
      _
    // Predicated region
    $region46: #{conv_transpose2_1d.1} parent=1 // pred_check
      _
    $region47: #{conv_transpose2_1d.1} parent=1 // pred_check_branch
      %1398 = sbr.rel (0) target = $region49
    $region48: #{conv_transpose2_1d.1} parent=1 // pred_region
      %1399 = dma.done [#allocation4], 8192
    $region49: #{conv_transpose2_1d.1} parent=1 // pred_fallthru
      _
    %1400 = vsyncpa [#allocation3], 1
    %1401 = vsyncpa [#allocation6], 1
    %1402 = vsyncpa [#allocation9], 1
    %1403 = vsyncpa [#allocation4], 1

</llo_original>
